<compile_context>
chip_gen: v7x
topology: tpu7x:2x2x1
jax: 0.10.0
libtpu: 0.0.40
codegen_flags: <defaults>
</compile_context>

<pallas_src>
import functools

import jax
import jax.numpy as jnp
from jax import lax
from jax.experimental import pallas as pl
from jax.experimental.pallas import tpu as pltpu


def _round_up(x, m):
    return (x + m - 1) // m * m


# ----------------------------------------------------------------------------
# Pallas kernel: chunk-level input projection + LSTM recurrence + final FC.
# PyTorch LSTM gate order (i, f, g, o):
#   i = sigmoid(x W_ii^T + b_ii + h W_hi^T + b_hi)
#   f = sigmoid(x W_if^T + b_if + h W_hf^T + b_hf)
#   g = tanh  (x W_ig^T + b_ig + h W_hg^T + b_hg)
#   o = sigmoid(x W_io^T + b_io + h W_ho^T + b_ho)
#   c_t = f * c_{t-1} + i * g ;  h_t = o * tanh(c_t)
# Both biases are pre-folded into b_ref and added with the x-projection.
# ----------------------------------------------------------------------------
def lstm_fc_kernel(x_ref, wi_ref, b_ref, wh_ref, wfc_ref, bfc_ref,
                   out_ref, h_scr, c_scr, xg_scr, *, unroll):
    chunk = pl.program_id(1)          # time-chunk index (sequential axis)

    @pl.when(chunk == 0)              # reset state at the start of each batch tile
    def _():
        h_scr[...] = jnp.zeros_like(h_scr)
        c_scr[...] = jnp.zeros_like(c_scr)

    tc, bt, e = x_ref.shape           # time steps in chunk, batch tile, embed (static)
    hp = h_scr.shape[-1]              # padded hidden dim (static)

    # Hoisted input-side projection for the WHOLE chunk (no sequential dep):
    # one bf16 MXU matmul (tc*bt, E) @ (E, 4*Hp) -> f32, biases pre-folded.
    x2 = x_ref[...].reshape(tc * bt, e).astype(jnp.bfloat16)
    xg_scr[...] = (jnp.dot(x2, wi_ref[...], preferred_element_type=jnp.float32)
                   + b_ref[...])

    w_h = wh_ref[...]                 # bf16 (Hp, 4*Hp), resident in VMEM

    def step(t, carry):
        h, c = carry
        row = pl.multiple_of(t * bt, bt)
        # One fused bf16 MXU matmul per step: (bt, Hp) @ (Hp, 4*Hp), f32 acc.
        gates = (xg_scr[pl.ds(row, bt), :]
                 + jnp.dot(h.astype(jnp.bfloat16), w_h,
                           preferred_element_type=jnp.float32))
        i = jax.nn.sigmoid(gates[:, 0 * hp:1 * hp])
        f = jax.nn.sigmoid(gates[:, 1 * hp:2 * hp])
        g = jnp.tanh(gates[:, 2 * hp:3 * hp])
        o = jax.nn.sigmoid(gates[:, 3 * hp:4 * hp])
        c_new = f * c + i * g
        h_new = o * jnp.tanh(c_new)
        return h_new, c_new

    h, c = lax.fori_loop(0, tc, step, (h_scr[...], c_scr[...]), unroll=unroll)
    h_scr[...] = h
    c_scr[...] = c

    # Final logits: fc(concat(output[:, -1], hidden[-1])).  The concat is
    # pre-folded in the wrapper, so this is a single (bt, Hp) @ (Hp, Cp) dot.
    @pl.when(chunk == pl.num_programs(1) - 1)
    def _():
        out_ref[...] = (jnp.dot(h.astype(jnp.bfloat16), wfc_ref[...],
                                preferred_element_type=jnp.float32)
                        + bfc_ref[...])


def lstm_fc_pallas(x, w_i, b, w_h, w_fc, b_fc, *, time_chunk, batch_tile):
    """x: (T, Bp, E) time-major padded embeddings. Returns padded logits (Bp, Cp)."""
    T, Bp, E = x.shape
    Hp = w_h.shape[0]
    Cp = w_fc.shape[1]
    G = 4 * Hp
    assert T % time_chunk == 0 and Bp % batch_tile == 0
    n_chunks = T // time_chunk
    n_btiles = Bp // batch_tile
    unroll = min(8, time_chunk)       # partial unroll: LLO visibility w/o bloat

    kernel = functools.partial(lstm_fc_kernel, unroll=unroll)

    const_vmem = pl.BlockSpec(memory_space=pltpu.MemorySpace.VMEM)  # single-buffered

    return pl.pallas_call(
        kernel,
        out_shape=jax.ShapeDtypeStruct((Bp, Cp), jnp.float32),
        grid_spec=pltpu.PrefetchScalarGridSpec(
            num_scalar_prefetch=0,
            grid=(n_btiles, n_chunks),          # (parallel batch tiles, sequential time)
            in_specs=[
                pl.BlockSpec((time_chunk, batch_tile, E),
                             lambda bi, ti: (ti, bi, 0)),   # streamed embeddings
                const_vmem,                                  # W_i  (E, 4*Hp)  bf16
                const_vmem,                                  # b    (1, 4*Hp)  f32
                const_vmem,                                  # W_h  (Hp, 4*Hp) bf16
                const_vmem,                                  # W_fc (Hp, Cp)   bf16
                const_vmem,                                  # b_fc (1, Cp)    f32
            ],
            out_specs=pl.BlockSpec((batch_tile, Cp), lambda bi, ti: (bi, 0)),
            scratch_shapes=[
                pltpu.VMEM((batch_tile, Hp), jnp.float32),              # h
                pltpu.VMEM((batch_tile, Hp), jnp.float32),              # c
                pltpu.VMEM((time_chunk * batch_tile, G), jnp.float32),  # xg chunk
            ],
        ),
        compiler_params=pltpu.CompilerParams(
            dimension_semantics=("parallel", "arbitrary"),  # batch || , time sequential
            vmem_limit_bytes=64 * 1024 * 1024,
        ),
    )(x, w_i, b, w_h, w_fc, b_fc)


# ----------------------------------------------------------------------------
# Parameters (deterministic, mimics PyTorch default inits & layouts).
# ----------------------------------------------------------------------------
def init_params(key, vocab_size, embed_dim, hidden_dim, num_classes):
    ks = jax.random.split(key, 7)
    k = 1.0 / jnp.sqrt(hidden_dim)

    embedding = jax.random.normal(ks[0], (vocab_size, embed_dim), jnp.float32)

    # PyTorch nn.LSTM layout: weight_ih (4H, E), weight_hh (4H, H), gates i,f,g,o.
    w_ih = jax.random.uniform(ks[1], (4 * hidden_dim, embed_dim), jnp.float32, -k, k)
    w_hh = jax.random.uniform(ks[2], (4 * hidden_dim, hidden_dim), jnp.float32, -k, k)
    b_ih = jax.random.uniform(ks[3], (4 * hidden_dim,), jnp.float32, -k, k)
    b_hh = jax.random.uniform(ks[4], (4 * hidden_dim,), jnp.float32, -k, k)

    # fc: implied Linear(2H, C) (see NOTE at top).
    k_fc = 1.0 / jnp.sqrt(2 * hidden_dim)
    w_fc = jax.random.uniform(ks[5], (num_classes, 2 * hidden_dim),
                              jnp.float32, -k_fc, k_fc)
    b_fc = jax.random.uniform(ks[6], (num_classes,), jnp.float32, -k_fc, k_fc)

    return embedding, (w_ih, w_hh, b_ih, b_hh), (w_fc, b_fc)


def prepare_kernel_params(lstm_params, fc_params, hidden_pad, class_pad):
    """Fuse/transpose/pad weights for the kernel (bf16 for MXU operands).
    Zero padding keeps padded hidden lanes at h = c = 0 for all time
    (padded gate pre-activations are exactly 0 -> i/f/o=0.5, g=0 -> c stays 0),
    and 0 is exact in bf16, so the invariant survives the dtype change."""
    w_ih, w_hh, b_ih, b_hh = lstm_params
    w_fc, b_fc = fc_params
    H = w_hh.shape[1]
    Hp = hidden_pad
    C = w_fc.shape[0]
    Cp = class_pad

    def pad_gate_dim(a):
        # a: (..., 4H) -> (..., 4*Hp), each of the 4 gates padded to Hp lanes.
        parts = [a[..., g * H:(g + 1) * H] for g in range(4)]
        pad = [(0, 0)] * (a.ndim - 1) + [(0, Hp - H)]
        return jnp.concatenate([jnp.pad(p, pad) for p in parts], axis=-1)

    w_i = pad_gate_dim(w_ih.T).astype(jnp.bfloat16)                 # (E, 4*Hp)
    w_h = pad_gate_dim(
        jnp.pad(w_hh.T, ((0, Hp - H), (0, 0)))).astype(jnp.bfloat16)  # (Hp, 4*Hp)
    # Both LSTM biases fold into one (gates are elementwise in their sum);
    # bias stays f32 and is added to the f32-accumulated x-projection.
    b = pad_gate_dim((b_ih + b_hh)[None, :])                        # (1, 4*Hp) f32

    # concat([h, h]) @ W_fc^T  ==  h @ (W_fc^T[:H] + W_fc^T[H:])
    w_fc_t = w_fc.T                                                 # (2H, C)
    w_fc_folded = w_fc_t[:H] + w_fc_t[H:]                           # (H, C)
    w_fc_p = jnp.pad(w_fc_folded,
                     ((0, Hp - H), (0, Cp - C))).astype(jnp.bfloat16)  # (Hp, Cp)
    b_fc_p = jnp.pad(b_fc[None, :], ((0, 0), (0, Cp - C)))          # (1, Cp) f32
    return w_i, b, w_h, w_fc_p, b_fc_p


# ----------------------------------------------------------------------------
# Full forward pass (matches LSTM.forward semantics).
# ----------------------------------------------------------------------------
@functools.partial(jax.jit, static_argnames=("max_time_chunk",))
def lstm_forward(input_ids, embedding, lstm_params, fc_params, *, max_time_chunk=32):
    B, T = input_ids.shape
    H = lstm_params[1].shape[1]
    C = fc_params[0].shape[0]
    Hp = _round_up(H, 128)            # lane-align hidden dim
    Cp = _round_up(C, 128)            # lane-dense output store

    # MXU occupancy scales with batch rows: callers should batch enough
    # sequences that Bp reaches >=128 (v5e) / 256 (v6e/v7x).  Batch tiles of
    # 128 feed the leading parallel grid axis (2 TCs on v7x).
    if B <= 128:
        Bp = _round_up(B, 8)
        batch_tile = Bp
    else:
        Bp = _round_up(B, 128)
        batch_tile = 128

    # Largest divisor of T (<= max_time_chunk) so the sequential grid axis is
    # short (grid=1 for short sequences) and per-step grid overhead amortizes.
    time_chunk = max(d for d in range(1, min(T, max_time_chunk) + 1) if T % d == 0)

    w_i, b, w_h, w_fc_p, b_fc_p = prepare_kernel_params(
        lstm_params, fc_params, Hp, Cp)

    # Embedding lookup (gather) stays in XLA glue; kernel streams embeddings.
    emb = jnp.take(embedding, input_ids, axis=0)          # (B, T, E)
    x = jnp.transpose(emb, (1, 0, 2))                      # (T, B, E) time-major
    x = jnp.pad(x, ((0, 0), (0, Bp - B), (0, 0)))          # (T, Bp, E)

    logits_p = lstm_fc_pallas(x, w_i, b, w_h, w_fc_p, b_fc_p,
                              time_chunk=time_chunk, batch_tile=batch_tile)
    return logits_p[:B, :C]


# Pure-JAX reference for correctness checking (unfused, unpadded, all-f32).
def lstm_reference(input_ids, embedding, lstm_params, fc_params):
    w_ih, w_hh, b_ih, b_hh = lstm_params
    w_fc, b_fc = fc_params
    emb = jnp.take(embedding, input_ids, axis=0)          # (B, T, E)
    B, T, _ = emb.shape
    H = w_hh.shape[1]
    h = jnp.zeros((B, H), jnp.float32)
    c = jnp.zeros((B, H), jnp.float32)
    for t in range(T):
        x_t = emb[:, t, :]
        gates = x_t @ w_ih.T + b_ih + h @ w_hh.T + b_hh
        i = jax.nn.sigmoid(gates[:, 0 * H:1 * H])
        f = jax.nn.sigmoid(gates[:, 1 * H:2 * H])
        g = jnp.tanh(gates[:, 2 * H:3 * H])
        o = jax.nn.sigmoid(gates[:, 3 * H:4 * H])
        c = f * c + i * g
        h = o * jnp.tanh(c)
    cat = jnp.concatenate([h, h], axis=1)
    return cat @ w_fc.T + b_fc


if __name__ == "__main__":
    # Small shapes: batch=2, seq=8, vocab=50, embed=16, hidden=128 (module
    # default, lane-aligned), classes=4.
    B, T = 2, 8
    VOCAB, EMBED, HIDDEN, CLASSES = 50, 16, 128, 4

    key = jax.random.PRNGKey(0)
    k_param, k_ids = jax.random.split(key)
    embedding, lstm_params, fc_params = init_params(
        k_param, VOCAB, EMBED, HIDDEN, CLASSES)

    input_ids = jax.random.randint(k_ids, (B, T), 0, VOCAB, dtype=jnp.int32)

    logits = lstm_forward(input_ids, embedding, lstm_params, fc_params)
    logits = jax.block_until_ready(logits)

    ref = lstm_reference(input_ids, embedding, lstm_params, fc_params)
    assert logits.shape == (B, CLASSES)
    # bf16 MXU operands (f32 accumulation / gate math) => slightly looser tol.
    assert jnp.allclose(logits, ref, atol=3e-2, rtol=3e-2), (logits, ref)

    print("KERNEL_OK")
</pallas_src>

<mosaic_0001>
module attributes {stable_mosaic.version = 11 : i64} {
  func.func @lstm_fc_kernel(%arg0: i32, %arg1: i32, %arg2: memref<8x8x16xf32, #tpu.memory_space<vmem>>, %arg3: memref<16x512xbf16, #tpu.memory_space<vmem>>, %arg4: memref<1x512xf32, #tpu.memory_space<vmem>>, %arg5: memref<128x512xbf16, #tpu.memory_space<vmem>>, %arg6: memref<128x128xbf16, #tpu.memory_space<vmem>>, %arg7: memref<1x128xf32, #tpu.memory_space<vmem>>, %arg8: memref<8x128xf32, #tpu.memory_space<vmem>>, %arg9: memref<8x128xf32, #tpu.memory_space<vmem>>, %arg10: memref<8x128xf32, #tpu.memory_space<vmem>>, %arg11: memref<64x512xf32, #tpu.memory_space<vmem>>) attributes {dimension_semantics = [#tpu.dimension_semantics<parallel>, #tpu.dimension_semantics<arbitrary>], iteration_bounds = array<i64: 1, 1>, scalar_prefetch = 0 : i64, scratch_operands = 3 : i64, tpu.core_type = #tpu.core_type<tc>, window_params = [{transform_indices = @transform_0, window_bounds = array<i64: 8, 8, 16>}, {pipeline_mode = #tpu.pipeline_mode<synchronous>, transform_indices = @transform_1, window_bounds = array<i64: 16, 512>}, {pipeline_mode = #tpu.pipeline_mode<synchronous>, transform_indices = @transform_2, window_bounds = array<i64: 1, 512>}, {pipeline_mode = #tpu.pipeline_mode<synchronous>, transform_indices = @transform_3, window_bounds = array<i64: 128, 512>}, {pipeline_mode = #tpu.pipeline_mode<synchronous>, transform_indices = @transform_4, window_bounds = array<i64: 128, 128>}, {pipeline_mode = #tpu.pipeline_mode<synchronous>, transform_indices = @transform_5, window_bounds = array<i64: 1, 128>}, {transform_indices = @transform_6, window_bounds = array<i64: 8, 128>}]} {
    %c0_i32 = arith.constant 0 : i32
    %0 = arith.cmpi eq, %arg1, %c0_i32 : i32
    %1 = arith.extui %0 : i1 to i32
    %c0_i32_0 = arith.constant 0 : i32
    %2 = arith.cmpi ne, %1, %c0_i32_0 : i32
    scf.if %2 {
      %cst_70 = arith.constant 0.000000e+00 : f32
      %276 = vector.broadcast %cst_70 : f32 to vector<8x128xf32>
      %c0_71 = arith.constant 0 : index
      %c0_72 = arith.constant 0 : index
      %277 = vector.load %arg9[%c0_71, %c0_72] : memref<8x128xf32, #tpu.memory_space<vmem>>, vector<8x128xf32>
      tpu.vector_store %arg9[%c0_71, %c0_72], %276 {strides = array<i32>} : memref<8x128xf32, #tpu.memory_space<vmem>>, vector<8x128xf32>,
      %cst_73 = arith.constant 0.000000e+00 : f32
      %278 = vector.broadcast %cst_73 : f32 to vector<8x128xf32>
      %c0_74 = arith.constant 0 : index
      %c0_75 = arith.constant 0 : index
      %279 = vector.load %arg10[%c0_74, %c0_75] : memref<8x128xf32, #tpu.memory_space<vmem>>, vector<8x128xf32>
      tpu.vector_store %arg10[%c0_74, %c0_75], %278 {strides = array<i32>} : memref<8x128xf32, #tpu.memory_space<vmem>>, vector<8x128xf32>,
    } else {
    }
    %c0 = arith.constant 0 : index
    %c0_1 = arith.constant 0 : index
    %c0_2 = arith.constant 0 : index
    %3 = vector.load %arg2[%c0, %c0_1, %c0_2] : memref<8x8x16xf32, #tpu.memory_space<vmem>>, vector<8x8x16xf32>
    %4 = vector.shape_cast %3 : vector<8x8x16xf32> to vector<64x16xf32>
    %5 = arith.truncf %4 : vector<64x16xf32> to vector<64x16xbf16>
    %c0_3 = arith.constant 0 : index
    %c0_4 = arith.constant 0 : index
    %6 = vector.load %arg3[%c0_3, %c0_4] : memref<16x512xbf16, #tpu.memory_space<vmem>>, vector<16x512xbf16>
    %cst = arith.constant dense<0.000000e+00> : vector<64x512xf32>
    %7 = tpu.matmul %5, %6, %cst {dimension_numbers = #tpu.dot_dimension_numbers<[1], [0], [0], [1], [0, 0, 1, 1], [], []>} : vector<64x16xbf16>, vector<16x512xbf16>, vector<64x512xf32> -> vector<64x512xf32>
    %c0_5 = arith.constant 0 : index
    %c0_6 = arith.constant 0 : index
    %8 = vector.load %arg4[%c0_5, %c0_6] : memref<1x512xf32, #tpu.memory_space<vmem>>, vector<1x512xf32>
    %9 = vector.broadcast %8 : vector<1x512xf32> to vector<64x512xf32>
    %10 = arith.addf %7, %9 : vector<64x512xf32>
    %c0_7 = arith.constant 0 : index
    %c0_8 = arith.constant 0 : index
    %11 = vector.load %arg11[%c0_7, %c0_8] : memref<64x512xf32, #tpu.memory_space<vmem>>, vector<64x512xf32>
    tpu.vector_store %arg11[%c0_7, %c0_8], %10 {strides = array<i32>} : memref<64x512xf32, #tpu.memory_space<vmem>>, vector<64x512xf32>,
    %c0_9 = arith.constant 0 : index
    %c0_10 = arith.constant 0 : index
    %12 = vector.load %arg5[%c0_9, %c0_10] : memref<128x512xbf16, #tpu.memory_space<vmem>>, vector<128x512xbf16>
    %c0_11 = arith.constant 0 : index
    %c0_12 = arith.constant 0 : index
    %13 = vector.load %arg9[%c0_11, %c0_12] : memref<8x128xf32, #tpu.memory_space<vmem>>, vector<8x128xf32>
    %c0_13 = arith.constant 0 : index
    %c0_14 = arith.constant 0 : index
    %14 = vector.load %arg10[%c0_13, %c0_14] : memref<8x128xf32, #tpu.memory_space<vmem>>, vector<8x128xf32>
    %c0_i32_15 = arith.constant 0 : i32
    %c8_i32 = arith.constant 8 : i32
    %15 = arith.muli %c0_i32_15, %c8_i32 : i32
    %16 = tpu.assume_multiple %15, 8 : i32
    %17 = arith.index_cast %16 : i32 to index
    %c0_16 = arith.constant 0 : index
    %18 = vector.load %arg11[%17, %c0_16] : memref<64x512xf32, #tpu.memory_space<vmem>>, vector<8x512xf32>
    %19 = arith.truncf %13 : vector<8x128xf32> to vector<8x128xbf16>
    %cst_17 = arith.constant dense<0.000000e+00> : vector<8x512xf32>
    %20 = tpu.matmul %19, %12, %cst_17 {dimension_numbers = #tpu.dot_dimension_numbers<[1], [0], [0], [1], [0, 0, 1, 1], [], []>} : vector<8x128xbf16>, vector<128x512xbf16>, vector<8x512xf32> -> vector<8x512xf32>
    %21 = arith.addf %18, %20 : vector<8x512xf32>
    %22 = vector.extract_strided_slice %21 {offsets = [0, 0], sizes = [8, 128], strides = [1, 1]} : vector<8x512xf32> to vector<8x128xf32>
    %23 = arith.negf %22 : vector<8x128xf32>
    %24 = math.exp %23 : vector<8x128xf32>
    %cst_18 = arith.constant 1.000000e+00 : f32
    %25 = vector.broadcast %cst_18 : f32 to vector<8x128xf32>
    %26 = arith.addf %25, %24 : vector<8x128xf32>
    %27 = arith.divf %25, %26 : vector<8x128xf32>
    %28 = vector.extract_strided_slice %21 {offsets = [0, 128], sizes = [8, 128], strides = [1, 1]} : vector<8x512xf32> to vector<8x128xf32>
    %29 = arith.negf %28 : vector<8x128xf32>
    %30 = math.exp %29 : vector<8x128xf32>
    %cst_19 = arith.constant 1.000000e+00 : f32
    %31 = vector.broadcast %cst_19 : f32 to vector<8x128xf32>
    %32 = arith.addf %31, %30 : vector<8x128xf32>
    %33 = arith.divf %31, %32 : vector<8x128xf32>
    %34 = vector.extract_strided_slice %21 {offsets = [0, 256], sizes = [8, 128], strides = [1, 1]} : vector<8x512xf32> to vector<8x128xf32>
    %35 = math.tanh %34 : vector<8x128xf32>
    %36 = vector.extract_strided_slice %21 {offsets = [0, 384], sizes = [8, 128], strides = [1, 1]} : vector<8x512xf32> to vector<8x128xf32>
    %37 = arith.negf %36 : vector<8x128xf32>
    %38 = math.exp %37 : vector<8x128xf32>
    %cst_20 = arith.constant 1.000000e+00 : f32
    %39 = vector.broadcast %cst_20 : f32 to vector<8x128xf32>
    %40 = arith.addf %39, %38 : vector<8x128xf32>
    %41 = arith.divf %39, %40 : vector<8x128xf32>
    %42 = arith.mulf %33, %14 : vector<8x128xf32>
    %43 = arith.mulf %27, %35 : vector<8x128xf32>
    %44 = arith.addf %42, %43 : vector<8x128xf32>
    %45 = math.tanh %44 : vector<8x128xf32>
    %46 = arith.mulf %41, %45 : vector<8x128xf32>
    %c1_i32 = arith.constant 1 : i32
    %c8_i32_21 = arith.constant 8 : i32
    %47 = arith.muli %c1_i32, %c8_i32_21 : i32
    %48 = tpu.assume_multiple %47, 8 : i32
    %49 = arith.index_cast %48 : i32 to index
    %c0_22 = arith.constant 0 : index
    %50 = vector.load %arg11[%49, %c0_22] : memref<64x512xf32, #tpu.memory_space<vmem>>, vector<8x512xf32>
    %51 = arith.truncf %46 : vector<8x128xf32> to vector<8x128xbf16>
    %cst_23 = arith.constant dense<0.000000e+00> : vector<8x512xf32>
    %52 = tpu.matmul %51, %12, %cst_23 {dimension_numbers = #tpu.dot_dimension_numbers<[1], [0], [0], [1], [0, 0, 1, 1], [], []>} : vector<8x128xbf16>, vector<128x512xbf16>, vector<8x512xf32> -> vector<8x512xf32>
    %53 = arith.addf %50, %52 : vector<8x512xf32>
    %54 = vector.extract_strided_slice %53 {offsets = [0, 0], sizes = [8, 128], strides = [1, 1]} : vector<8x512xf32> to vector<8x128xf32>
    %55 = arith.negf %54 : vector<8x128xf32>
    %56 = math.exp %55 : vector<8x128xf32>
    %cst_24 = arith.constant 1.000000e+00 : f32
    %57 = vector.broadcast %cst_24 : f32 to vector<8x128xf32>
    %58 = arith.addf %57, %56 : vector<8x128xf32>
    %59 = arith.divf %57, %58 : vector<8x128xf32>
    %60 = vector.extract_strided_slice %53 {offsets = [0, 128], sizes = [8, 128], strides = [1, 1]} : vector<8x512xf32> to vector<8x128xf32>
    %61 = arith.negf %60 : vector<8x128xf32>
    %62 = math.exp %61 : vector<8x128xf32>
    %cst_25 = arith.constant 1.000000e+00 : f32
    %63 = vector.broadcast %cst_25 : f32 to vector<8x128xf32>
    %64 = arith.addf %63, %62 : vector<8x128xf32>
    %65 = arith.divf %63, %64 : vector<8x128xf32>
    %66 = vector.extract_strided_slice %53 {offsets = [0, 256], sizes = [8, 128], strides = [1, 1]} : vector<8x512xf32> to vector<8x128xf32>
    %67 = math.tanh %66 : vector<8x128xf32>
    %68 = vector.extract_strided_slice %53 {offsets = [0, 384], sizes = [8, 128], strides = [1, 1]} : vector<8x512xf32> to vector<8x128xf32>
    %69 = arith.negf %68 : vector<8x128xf32>
    %70 = math.exp %69 : vector<8x128xf32>
    %cst_26 = arith.constant 1.000000e+00 : f32
    %71 = vector.broadcast %cst_26 : f32 to vector<8x128xf32>
    %72 = arith.addf %71, %70 : vector<8x128xf32>
    %73 = arith.divf %71, %72 : vector<8x128xf32>
    %74 = arith.mulf %65, %44 : vector<8x128xf32>
    %75 = arith.mulf %59, %67 : vector<8x128xf32>
    %76 = arith.addf %74, %75 : vector<8x128xf32>
    %77 = math.tanh %76 : vector<8x128xf32>
    %78 = arith.mulf %73, %77 : vector<8x128xf32>
    %c2_i32 = arith.constant 2 : i32
    %c8_i32_27 = arith.constant 8 : i32
    %79 = arith.muli %c2_i32, %c8_i32_27 : i32
    %80 = tpu.assume_multiple %79, 8 : i32
    %81 = arith.index_cast %80 : i32 to index
    %c0_28 = arith.constant 0 : index
    %82 = vector.load %arg11[%81, %c0_28] : memref<64x512xf32, #tpu.memory_space<vmem>>, vector<8x512xf32>
    %83 = arith.truncf %78 : vector<8x128xf32> to vector<8x128xbf16>
    %cst_29 = arith.constant dense<0.000000e+00> : vector<8x512xf32>
    %84 = tpu.matmul %83, %12, %cst_29 {dimension_numbers = #tpu.dot_dimension_numbers<[1], [0], [0], [1], [0, 0, 1, 1], [], []>} : vector<8x128xbf16>, vector<128x512xbf16>, vector<8x512xf32> -> vector<8x512xf32>
    %85 = arith.addf %82, %84 : vector<8x512xf32>
    %86 = vector.extract_strided_slice %85 {offsets = [0, 0], sizes = [8, 128], strides = [1, 1]} : vector<8x512xf32> to vector<8x128xf32>
    %87 = arith.negf %86 : vector<8x128xf32>
    %88 = math.exp %87 : vector<8x128xf32>
    %cst_30 = arith.constant 1.000000e+00 : f32
    %89 = vector.broadcast %cst_30 : f32 to vector<8x128xf32>
    %90 = arith.addf %89, %88 : vector<8x128xf32>
    %91 = arith.divf %89, %90 : vector<8x128xf32>
    %92 = vector.extract_strided_slice %85 {offsets = [0, 128], sizes = [8, 128], strides = [1, 1]} : vector<8x512xf32> to vector<8x128xf32>
    %93 = arith.negf %92 : vector<8x128xf32>
    %94 = math.exp %93 : vector<8x128xf32>
    %cst_31 = arith.constant 1.000000e+00 : f32
    %95 = vector.broadcast %cst_31 : f32 to vector<8x128xf32>
    %96 = arith.addf %95, %94 : vector<8x128xf32>
    %97 = arith.divf %95, %96 : vector<8x128xf32>
    %98 = vector.extract_strided_slice %85 {offsets = [0, 256], sizes = [8, 128], strides = [1, 1]} : vector<8x512xf32> to vector<8x128xf32>
    %99 = math.tanh %98 : vector<8x128xf32>
    %100 = vector.extract_strided_slice %85 {offsets = [0, 384], sizes = [8, 128], strides = [1, 1]} : vector<8x512xf32> to vector<8x128xf32>
    %101 = arith.negf %100 : vector<8x128xf32>
    %102 = math.exp %101 : vector<8x128xf32>
    %cst_32 = arith.constant 1.000000e+00 : f32
    %103 = vector.broadcast %cst_32 : f32 to vector<8x128xf32>
    %104 = arith.addf %103, %102 : vector<8x128xf32>
    %105 = arith.divf %103, %104 : vector<8x128xf32>
    %106 = arith.mulf %97, %76 : vector<8x128xf32>
    %107 = arith.mulf %91, %99 : vector<8x128xf32>
    %108 = arith.addf %106, %107 : vector<8x128xf32>
    %109 = math.tanh %108 : vector<8x128xf32>
    %110 = arith.mulf %105, %109 : vector<8x128xf32>
    %c3_i32 = arith.constant 3 : i32
    %c8_i32_33 = arith.constant 8 : i32
    %111 = arith.muli %c3_i32, %c8_i32_33 : i32
    %112 = tpu.assume_multiple %111, 8 : i32
    %113 = arith.index_cast %112 : i32 to index
    %c0_34 = arith.constant 0 : index
    %114 = vector.load %arg11[%113, %c0_34] : memref<64x512xf32, #tpu.memory_space<vmem>>, vector<8x512xf32>
    %115 = arith.truncf %110 : vector<8x128xf32> to vector<8x128xbf16>
    %cst_35 = arith.constant dense<0.000000e+00> : vector<8x512xf32>
    %116 = tpu.matmul %115, %12, %cst_35 {dimension_numbers = #tpu.dot_dimension_numbers<[1], [0], [0], [1], [0, 0, 1, 1], [], []>} : vector<8x128xbf16>, vector<128x512xbf16>, vector<8x512xf32> -> vector<8x512xf32>
    %117 = arith.addf %114, %116 : vector<8x512xf32>
    %118 = vector.extract_strided_slice %117 {offsets = [0, 0], sizes = [8, 128], strides = [1, 1]} : vector<8x512xf32> to vector<8x128xf32>
    %119 = arith.negf %118 : vector<8x128xf32>
    %120 = math.exp %119 : vector<8x128xf32>
    %cst_36 = arith.constant 1.000000e+00 : f32
    %121 = vector.broadcast %cst_36 : f32 to vector<8x128xf32>
    %122 = arith.addf %121, %120 : vector<8x128xf32>
    %123 = arith.divf %121, %122 : vector<8x128xf32>
    %124 = vector.extract_strided_slice %117 {offsets = [0, 128], sizes = [8, 128], strides = [1, 1]} : vector<8x512xf32> to vector<8x128xf32>
    %125 = arith.negf %124 : vector<8x128xf32>
    %126 = math.exp %125 : vector<8x128xf32>
    %cst_37 = arith.constant 1.000000e+00 : f32
    %127 = vector.broadcast %cst_37 : f32 to vector<8x128xf32>
    %128 = arith.addf %127, %126 : vector<8x128xf32>
    %129 = arith.divf %127, %128 : vector<8x128xf32>
    %130 = vector.extract_strided_slice %117 {offsets = [0, 256], sizes = [8, 128], strides = [1, 1]} : vector<8x512xf32> to vector<8x128xf32>
    %131 = math.tanh %130 : vector<8x128xf32>
    %132 = vector.extract_strided_slice %117 {offsets = [0, 384], sizes = [8, 128], strides = [1, 1]} : vector<8x512xf32> to vector<8x128xf32>
    %133 = arith.negf %132 : vector<8x128xf32>
    %134 = math.exp %133 : vector<8x128xf32>
    %cst_38 = arith.constant 1.000000e+00 : f32
    %135 = vector.broadcast %cst_38 : f32 to vector<8x128xf32>
    %136 = arith.addf %135, %134 : vector<8x128xf32>
    %137 = arith.divf %135, %136 : vector<8x128xf32>
    %138 = arith.mulf %129, %108 : vector<8x128xf32>
    %139 = arith.mulf %123, %131 : vector<8x128xf32>
    %140 = arith.addf %138, %139 : vector<8x128xf32>
    %141 = math.tanh %140 : vector<8x128xf32>
    %142 = arith.mulf %137, %141 : vector<8x128xf32>
    %c4_i32 = arith.constant 4 : i32
    %c8_i32_39 = arith.constant 8 : i32
    %143 = arith.muli %c4_i32, %c8_i32_39 : i32
    %144 = tpu.assume_multiple %143, 8 : i32
    %145 = arith.index_cast %144 : i32 to index
    %c0_40 = arith.constant 0 : index
    %146 = vector.load %arg11[%145, %c0_40] : memref<64x512xf32, #tpu.memory_space<vmem>>, vector<8x512xf32>
    %147 = arith.truncf %142 : vector<8x128xf32> to vector<8x128xbf16>
    %cst_41 = arith.constant dense<0.000000e+00> : vector<8x512xf32>
    %148 = tpu.matmul %147, %12, %cst_41 {dimension_numbers = #tpu.dot_dimension_numbers<[1], [0], [0], [1], [0, 0, 1, 1], [], []>} : vector<8x128xbf16>, vector<128x512xbf16>, vector<8x512xf32> -> vector<8x512xf32>
    %149 = arith.addf %146, %148 : vector<8x512xf32>
    %150 = vector.extract_strided_slice %149 {offsets = [0, 0], sizes = [8, 128], strides = [1, 1]} : vector<8x512xf32> to vector<8x128xf32>
    %151 = arith.negf %150 : vector<8x128xf32>
    %152 = math.exp %151 : vector<8x128xf32>
    %cst_42 = arith.constant 1.000000e+00 : f32
    %153 = vector.broadcast %cst_42 : f32 to vector<8x128xf32>
    %154 = arith.addf %153, %152 : vector<8x128xf32>
    %155 = arith.divf %153, %154 : vector<8x128xf32>
    %156 = vector.extract_strided_slice %149 {offsets = [0, 128], sizes = [8, 128], strides = [1, 1]} : vector<8x512xf32> to vector<8x128xf32>
    %157 = arith.negf %156 : vector<8x128xf32>
    %158 = math.exp %157 : vector<8x128xf32>
    %cst_43 = arith.constant 1.000000e+00 : f32
    %159 = vector.broadcast %cst_43 : f32 to vector<8x128xf32>
    %160 = arith.addf %159, %158 : vector<8x128xf32>
    %161 = arith.divf %159, %160 : vector<8x128xf32>
    %162 = vector.extract_strided_slice %149 {offsets = [0, 256], sizes = [8, 128], strides = [1, 1]} : vector<8x512xf32> to vector<8x128xf32>
    %163 = math.tanh %162 : vector<8x128xf32>
    %164 = vector.extract_strided_slice %149 {offsets = [0, 384], sizes = [8, 128], strides = [1, 1]} : vector<8x512xf32> to vector<8x128xf32>
    %165 = arith.negf %164 : vector<8x128xf32>
    %166 = math.exp %165 : vector<8x128xf32>
    %cst_44 = arith.constant 1.000000e+00 : f32
    %167 = vector.broadcast %cst_44 : f32 to vector<8x128xf32>
    %168 = arith.addf %167, %166 : vector<8x128xf32>
    %169 = arith.divf %167, %168 : vector<8x128xf32>
    %170 = arith.mulf %161, %140 : vector<8x128xf32>
    %171 = arith.mulf %155, %163 : vector<8x128xf32>
    %172 = arith.addf %170, %171 : vector<8x128xf32>
    %173 = math.tanh %172 : vector<8x128xf32>
    %174 = arith.mulf %169, %173 : vector<8x128xf32>
    %c5_i32 = arith.constant 5 : i32
    %c8_i32_45 = arith.constant 8 : i32
    %175 = arith.muli %c5_i32, %c8_i32_45 : i32
    %176 = tpu.assume_multiple %175, 8 : i32
    %177 = arith.index_cast %176 : i32 to index
    %c0_46 = arith.constant 0 : index
    %178 = vector.load %arg11[%177, %c0_46] : memref<64x512xf32, #tpu.memory_space<vmem>>, vector<8x512xf32>
    %179 = arith.truncf %174 : vector<8x128xf32> to vector<8x128xbf16>
    %cst_47 = arith.constant dense<0.000000e+00> : vector<8x512xf32>
    %180 = tpu.matmul %179, %12, %cst_47 {dimension_numbers = #tpu.dot_dimension_numbers<[1], [0], [0], [1], [0, 0, 1, 1], [], []>} : vector<8x128xbf16>, vector<128x512xbf16>, vector<8x512xf32> -> vector<8x512xf32>
    %181 = arith.addf %178, %180 : vector<8x512xf32>
    %182 = vector.extract_strided_slice %181 {offsets = [0, 0], sizes = [8, 128], strides = [1, 1]} : vector<8x512xf32> to vector<8x128xf32>
    %183 = arith.negf %182 : vector<8x128xf32>
    %184 = math.exp %183 : vector<8x128xf32>
    %cst_48 = arith.constant 1.000000e+00 : f32
    %185 = vector.broadcast %cst_48 : f32 to vector<8x128xf32>
    %186 = arith.addf %185, %184 : vector<8x128xf32>
    %187 = arith.divf %185, %186 : vector<8x128xf32>
    %188 = vector.extract_strided_slice %181 {offsets = [0, 128], sizes = [8, 128], strides = [1, 1]} : vector<8x512xf32> to vector<8x128xf32>
    %189 = arith.negf %188 : vector<8x128xf32>
    %190 = math.exp %189 : vector<8x128xf32>
    %cst_49 = arith.constant 1.000000e+00 : f32
    %191 = vector.broadcast %cst_49 : f32 to vector<8x128xf32>
    %192 = arith.addf %191, %190 : vector<8x128xf32>
    %193 = arith.divf %191, %192 : vector<8x128xf32>
    %194 = vector.extract_strided_slice %181 {offsets = [0, 256], sizes = [8, 128], strides = [1, 1]} : vector<8x512xf32> to vector<8x128xf32>
    %195 = math.tanh %194 : vector<8x128xf32>
    %196 = vector.extract_strided_slice %181 {offsets = [0, 384], sizes = [8, 128], strides = [1, 1]} : vector<8x512xf32> to vector<8x128xf32>
    %197 = arith.negf %196 : vector<8x128xf32>
    %198 = math.exp %197 : vector<8x128xf32>
    %cst_50 = arith.constant 1.000000e+00 : f32
    %199 = vector.broadcast %cst_50 : f32 to vector<8x128xf32>
    %200 = arith.addf %199, %198 : vector<8x128xf32>
    %201 = arith.divf %199, %200 : vector<8x128xf32>
    %202 = arith.mulf %193, %172 : vector<8x128xf32>
    %203 = arith.mulf %187, %195 : vector<8x128xf32>
    %204 = arith.addf %202, %203 : vector<8x128xf32>
    %205 = math.tanh %204 : vector<8x128xf32>
    %206 = arith.mulf %201, %205 : vector<8x128xf32>
    %c6_i32 = arith.constant 6 : i32
    %c8_i32_51 = arith.constant 8 : i32
    %207 = arith.muli %c6_i32, %c8_i32_51 : i32
    %208 = tpu.assume_multiple %207, 8 : i32
    %209 = arith.index_cast %208 : i32 to index
    %c0_52 = arith.constant 0 : index
    %210 = vector.load %arg11[%209, %c0_52] : memref<64x512xf32, #tpu.memory_space<vmem>>, vector<8x512xf32>
    %211 = arith.truncf %206 : vector<8x128xf32> to vector<8x128xbf16>
    %cst_53 = arith.constant dense<0.000000e+00> : vector<8x512xf32>
    %212 = tpu.matmul %211, %12, %cst_53 {dimension_numbers = #tpu.dot_dimension_numbers<[1], [0], [0], [1], [0, 0, 1, 1], [], []>} : vector<8x128xbf16>, vector<128x512xbf16>, vector<8x512xf32> -> vector<8x512xf32>
    %213 = arith.addf %210, %212 : vector<8x512xf32>
    %214 = vector.extract_strided_slice %213 {offsets = [0, 0], sizes = [8, 128], strides = [1, 1]} : vector<8x512xf32> to vector<8x128xf32>
    %215 = arith.negf %214 : vector<8x128xf32>
    %216 = math.exp %215 : vector<8x128xf32>
    %cst_54 = arith.constant 1.000000e+00 : f32
    %217 = vector.broadcast %cst_54 : f32 to vector<8x128xf32>
    %218 = arith.addf %217, %216 : vector<8x128xf32>
    %219 = arith.divf %217, %218 : vector<8x128xf32>
    %220 = vector.extract_strided_slice %213 {offsets = [0, 128], sizes = [8, 128], strides = [1, 1]} : vector<8x512xf32> to vector<8x128xf32>
    %221 = arith.negf %220 : vector<8x128xf32>
    %222 = math.exp %221 : vector<8x128xf32>
    %cst_55 = arith.constant 1.000000e+00 : f32
    %223 = vector.broadcast %cst_55 : f32 to vector<8x128xf32>
    %224 = arith.addf %223, %222 : vector<8x128xf32>
    %225 = arith.divf %223, %224 : vector<8x128xf32>
    %226 = vector.extract_strided_slice %213 {offsets = [0, 256], sizes = [8, 128], strides = [1, 1]} : vector<8x512xf32> to vector<8x128xf32>
    %227 = math.tanh %226 : vector<8x128xf32>
    %228 = vector.extract_strided_slice %213 {offsets = [0, 384], sizes = [8, 128], strides = [1, 1]} : vector<8x512xf32> to vector<8x128xf32>
    %229 = arith.negf %228 : vector<8x128xf32>
    %230 = math.exp %229 : vector<8x128xf32>
    %cst_56 = arith.constant 1.000000e+00 : f32
    %231 = vector.broadcast %cst_56 : f32 to vector<8x128xf32>
    %232 = arith.addf %231, %230 : vector<8x128xf32>
    %233 = arith.divf %231, %232 : vector<8x128xf32>
    %234 = arith.mulf %225, %204 : vector<8x128xf32>
    %235 = arith.mulf %219, %227 : vector<8x128xf32>
    %236 = arith.addf %234, %235 : vector<8x128xf32>
    %237 = math.tanh %236 : vector<8x128xf32>
    %238 = arith.mulf %233, %237 : vector<8x128xf32>
    %c7_i32 = arith.constant 7 : i32
    %c8_i32_57 = arith.constant 8 : i32
    %239 = arith.muli %c7_i32, %c8_i32_57 : i32
    %240 = tpu.assume_multiple %239, 8 : i32
    %241 = arith.index_cast %240 : i32 to index
    %c0_58 = arith.constant 0 : index
    %242 = vector.load %arg11[%241, %c0_58] : memref<64x512xf32, #tpu.memory_space<vmem>>, vector<8x512xf32>
    %243 = arith.truncf %238 : vector<8x128xf32> to vector<8x128xbf16>
    %cst_59 = arith.constant dense<0.000000e+00> : vector<8x512xf32>
    %244 = tpu.matmul %243, %12, %cst_59 {dimension_numbers = #tpu.dot_dimension_numbers<[1], [0], [0], [1], [0, 0, 1, 1], [], []>} : vector<8x128xbf16>, vector<128x512xbf16>, vector<8x512xf32> -> vector<8x512xf32>
    %245 = arith.addf %242, %244 : vector<8x512xf32>
    %246 = vector.extract_strided_slice %245 {offsets = [0, 0], sizes = [8, 128], strides = [1, 1]} : vector<8x512xf32> to vector<8x128xf32>
    %247 = arith.negf %246 : vector<8x128xf32>
    %248 = math.exp %247 : vector<8x128xf32>
    %cst_60 = arith.constant 1.000000e+00 : f32
    %249 = vector.broadcast %cst_60 : f32 to vector<8x128xf32>
    %250 = arith.addf %249, %248 : vector<8x128xf32>
    %251 = arith.divf %249, %250 : vector<8x128xf32>
    %252 = vector.extract_strided_slice %245 {offsets = [0, 128], sizes = [8, 128], strides = [1, 1]} : vector<8x512xf32> to vector<8x128xf32>
    %253 = arith.negf %252 : vector<8x128xf32>
    %254 = math.exp %253 : vector<8x128xf32>
    %cst_61 = arith.constant 1.000000e+00 : f32
    %255 = vector.broadcast %cst_61 : f32 to vector<8x128xf32>
    %256 = arith.addf %255, %254 : vector<8x128xf32>
    %257 = arith.divf %255, %256 : vector<8x128xf32>
    %258 = vector.extract_strided_slice %245 {offsets = [0, 256], sizes = [8, 128], strides = [1, 1]} : vector<8x512xf32> to vector<8x128xf32>
    %259 = math.tanh %258 : vector<8x128xf32>
    %260 = vector.extract_strided_slice %245 {offsets = [0, 384], sizes = [8, 128], strides = [1, 1]} : vector<8x512xf32> to vector<8x128xf32>
    %261 = arith.negf %260 : vector<8x128xf32>
    %262 = math.exp %261 : vector<8x128xf32>
    %cst_62 = arith.constant 1.000000e+00 : f32
    %263 = vector.broadcast %cst_62 : f32 to vector<8x128xf32>
    %264 = arith.addf %263, %262 : vector<8x128xf32>
    %265 = arith.divf %263, %264 : vector<8x128xf32>
    %266 = arith.mulf %257, %236 : vector<8x128xf32>
    %267 = arith.mulf %251, %259 : vector<8x128xf32>
    %268 = arith.addf %266, %267 : vector<8x128xf32>
    %269 = math.tanh %268 : vector<8x128xf32>
    %270 = arith.mulf %265, %269 : vector<8x128xf32>
    %c8_i32_63 = arith.constant 8 : i32
    %c0_64 = arith.constant 0 : index
    %c0_65 = arith.constant 0 : index
    %271 = vector.load %arg9[%c0_64, %c0_65] : memref<8x128xf32, #tpu.memory_space<vmem>>, vector<8x128xf32>
    tpu.vector_store %arg9[%c0_64, %c0_65], %270 {strides = array<i32>} : memref<8x128xf32, #tpu.memory_space<vmem>>, vector<8x128xf32>,
    %c0_66 = arith.constant 0 : index
    %c0_67 = arith.constant 0 : index
    %272 = vector.load %arg10[%c0_66, %c0_67] : memref<8x128xf32, #tpu.memory_space<vmem>>, vector<8x128xf32>
    tpu.vector_store %arg10[%c0_66, %c0_67], %268 {strides = array<i32>} : memref<8x128xf32, #tpu.memory_space<vmem>>, vector<8x128xf32>,
    %c0_i32_68 = arith.constant 0 : i32
    %273 = arith.cmpi eq, %arg1, %c0_i32_68 : i32
    %274 = arith.extui %273 : i1 to i32
    %c0_i32_69 = arith.constant 0 : i32
    %275 = arith.cmpi ne, %274, %c0_i32_69 : i32
    scf.if %275 {
      %276 = arith.truncf %270 : vector<8x128xf32> to vector<8x128xbf16>
      %c0_70 = arith.constant 0 : index
      %c0_71 = arith.constant 0 : index
      %277 = vector.load %arg6[%c0_70, %c0_71] : memref<128x128xbf16, #tpu.memory_space<vmem>>, vector<128x128xbf16>
      %cst_72 = arith.constant dense<0.000000e+00> : vector<8x128xf32>
      %278 = tpu.matmul %276, %277, %cst_72 {dimension_numbers = #tpu.dot_dimension_numbers<[1], [0], [0], [1], [0, 0, 1, 1], [], []>} : vector<8x128xbf16>, vector<128x128xbf16>, vector<8x128xf32> -> vector<8x128xf32>
      %c0_73 = arith.constant 0 : index
      %c0_74 = arith.constant 0 : index
      %279 = vector.load %arg7[%c0_73, %c0_74] : memref<1x128xf32, #tpu.memory_space<vmem>>, vector<1x128xf32>
      %280 = vector.broadcast %279 : vector<1x128xf32> to vector<8x128xf32>
      %281 = arith.addf %278, %280 : vector<8x128xf32>
      %c0_75 = arith.constant 0 : index
      %c0_76 = arith.constant 0 : index
      %282 = vector.load %arg8[%c0_75, %c0_76] : memref<8x128xf32, #tpu.memory_space<vmem>>, vector<8x128xf32>
      tpu.vector_store %arg8[%c0_75, %c0_76], %281 {strides = array<i32>} : memref<8x128xf32, #tpu.memory_space<vmem>>, vector<8x128xf32>,
    } else {
    }
    return
  }
  func.func @transform_0(%arg0: i32, %arg1: i32) -> (i32, i32, i32) {
    %c0_i32 = arith.constant 0 : i32
    %c0_i32_0 = arith.constant 0 : i32
    return %arg1, %arg0, %c0_i32 : i32, i32, i32
  }
  func.func @transform_1(%arg0: i32, %arg1: i32) -> (i32, i32) {
    %c0_i32 = arith.constant 0 : i32
    %c0_i32_0 = arith.constant 0 : i32
    %c0_i32_1 = arith.constant 0 : i32
    return %c0_i32, %c0_i32_0 : i32, i32
  }
  func.func @transform_2(%arg0: i32, %arg1: i32) -> (i32, i32) {
    %c0_i32 = arith.constant 0 : i32
    %c0_i32_0 = arith.constant 0 : i32
    %c0_i32_1 = arith.constant 0 : i32
    return %c0_i32, %c0_i32_0 : i32, i32
  }
  func.func @transform_3(%arg0: i32, %arg1: i32) -> (i32, i32) {
    %c0_i32 = arith.constant 0 : i32
    %c0_i32_0 = arith.constant 0 : i32
    %c0_i32_1 = arith.constant 0 : i32
    return %c0_i32, %c0_i32_0 : i32, i32
  }
  func.func @transform_4(%arg0: i32, %arg1: i32) -> (i32, i32) {
    %c0_i32 = arith.constant 0 : i32
    %c0_i32_0 = arith.constant 0 : i32
    %c0_i32_1 = arith.constant 0 : i32
    return %c0_i32, %c0_i32_0 : i32, i32
  }
  func.func @transform_5(%arg0: i32, %arg1: i32) -> (i32, i32) {
    %c0_i32 = arith.constant 0 : i32
    %c0_i32_0 = arith.constant 0 : i32
    %c0_i32_1 = arith.constant 0 : i32
    return %c0_i32, %c0_i32_0 : i32, i32
  }
  func.func @transform_6(%arg0: i32, %arg1: i32) -> (i32, i32) {
    %c0_i32 = arith.constant 0 : i32
    %c0_i32_0 = arith.constant 0 : i32
    return %arg0, %c0_i32 : i32, i32
  }
}

</mosaic_0001>

<llo_original>
// kernel: lstm_forward.1
$region0: #{lstm_forward.1}
  #allocation0 [shape = 'u32[]', space=smem, size = 0x4, offset = 0x4, fixed_abs, tag = 'smem constant byte address 0x4 - core index']
  #allocation1 [shape = 'u32[144,128]{1,0:T(1,128)}', space=vmem, size = 0x12000, scoped, tag = 'internal scratch']
  #allocation2 [shape = 'f32[8,128]{1,0:T(8,128)}', space=vmem, size = 0x1000, scoped, tag = 'scratch operand']
  #allocation3 [shape = 'f32[8,128]{1,0:T(8,128)}', space=vmem, size = 0x1000, scoped, tag = 'scratch operand']
  #allocation4 [shape = 'f32[64,512]{1,0:T(8,128)}', space=vmem, size = 0x20000, scoped, tag = 'scratch operand']
  %s0 = inlined_call_operand.hbm [shape: f32[8,8,16], index: 0, kind: input, shape index: {}]
  %s1 = inlined_call_operand.hbm [shape: bf16[16,512], index: 1, kind: input, shape index: {}]
  %s2 = inlined_call_operand.hbm [shape: f32[1,512], index: 2, kind: input, shape index: {}]
  %s3 = inlined_call_operand.hbm [shape: bf16[128,512], index: 3, kind: input, shape index: {}]
  %s4 = inlined_call_operand.hbm [shape: bf16[128,128], index: 4, kind: input, shape index: {}]
  %s5 = inlined_call_operand.hbm [shape: f32[1,128], index: 5, kind: input, shape index: {}]
  %s6 = inlined_call_operand.hbm [shape: f32[8,128], index: 6, kind: output, shape index: {}]
  %s7 = sld [smem:[#allocation0]]
  $region66: #{lstm_forward.1} parent=0
    _
  %s9 = ssub.s32 1, %s7
  %s10 = scalar_select 0, %s9, %s7
  $region1: #{lstm_forward.1} parent=0
    #allocation5 [shape = 'u8[32768]{0}', space=vmem, size = 0x8000, scoped, tag = 'input window, operand 0, single buffered']
    #allocation6 [shape = 's32[1]{0}', space=sflag, size = 0x4, scoped, tag = 'scoped memory for lstm_forward.1']
    #allocation7 [shape = 's32[1]{0}', space=sflag, size = 0x4, scoped, tag = 'scoped memory for lstm_forward.1']
    #allocation8 [shape = 'u8[16384]{0}', space=vmem, size = 0x4000, scoped, tag = 'input window, operand 1, single buffered']
    #allocation9 [shape = 's32[1]{0}', space=sflag, size = 0x4, scoped, tag = 'scoped memory for lstm_forward.1']
    #allocation10 [shape = 'u8[2048]{0}', space=vmem, size = 0x800, scoped, tag = 'input window, operand 2, single buffered']
    #allocation11 [shape = 'u8[131072]{0}', space=vmem, size = 0x20000, scoped, tag = 'input window, operand 3, single buffered']
    #allocation12 [shape = 's32[1]{0}', space=sflag, size = 0x4, scoped, tag = 'scoped memory for lstm_forward.1']
    #allocation13 [shape = 'u8[32768]{0}', space=vmem, size = 0x8000, scoped, tag = 'input window, operand 4, single buffered']
    #allocation14 [shape = 'u8[512]{0}', space=vmem, size = 0x400, scoped, tag = 'input window, operand 5, single buffered']
    #allocation15 [shape = 's32[1]{0}', space=sflag, size = 0x4, scoped, tag = 'scoped memory for lstm_forward.1']
    #allocation16 [shape = 'u8[4096]{0}', space=vmem, size = 0x1000, scoped, tag = 'output window, operand 0, single buffered']
    %11 = vsyncpa [#allocation6], 0
    %12 = vsyncpa [#allocation9], 0
    %13 = vsyncpa [#allocation12], 0
    %14 = vsyncpa [#allocation15], 0
    %15 = vsyncpa [#allocation7], 0
    // Predicated region
    $region2: #{lstm_forward.1} parent=1 // pred_check
      _
    $region3: #{lstm_forward.1} parent=1 // pred_check_branch
      %17 = sbr.rel (0) target = $region5
    $region4: #{lstm_forward.1} parent=1 // pred_region
      %s19 = ssub.s32 1024, 1024
      %20 = vsyncadd [#allocation6], %s19
      %s21 = sshll.u32 [#allocation5], 4
      %s22 = int_to_ptr.vmem [resolvable:$true] %s21
      %27 = dma.hbm_to_vmem [thread:$0]  %s0, 1024, %s22, [#allocation6], 128, 128, 8
    $region5: #{lstm_forward.1} parent=1 // pred_fallthru
      _
    // Predicated region
    $region6: #{lstm_forward.1} parent=1 // pred_check
      _
    $region7: #{lstm_forward.1} parent=1 // pred_check_branch
      %29 = sbr.rel (0) target = $region9
    $region8: #{lstm_forward.1} parent=1 // pred_region
      %s31 = ssub.s32 512, 512
      %32 = vsyncadd [#allocation9], %s31
      %s33 = sshll.u32 [#allocation8], 4
      %s34 = int_to_ptr.vmem [resolvable:$true] %s33
      %39 = dma.hbm_to_vmem [thread:$0]  %s1, 512, %s34, [#allocation9], 256, 256, 16
    $region9: #{lstm_forward.1} parent=1 // pred_fallthru
      _
    // Predicated region
    $region10: #{lstm_forward.1} parent=1 // pred_check
      _
    $region11: #{lstm_forward.1} parent=1 // pred_check_branch
      %41 = sbr.rel (0) target = $region13
    $region12: #{lstm_forward.1} parent=1 // pred_region
      %s43 = ssub.s32 64, 64
      %44 = vsyncadd [#allocation9], %s43
      %s46 = sshll.u32 [#allocation10], 4
      %s47 = int_to_ptr.vmem [resolvable:$true] %s46
      %49 = dma.hbm_to_vmem [thread:$0]  %s2, 64, %s47, [#allocation9]
    $region13: #{lstm_forward.1} parent=1 // pred_fallthru
      _
    // Predicated region
    $region14: #{lstm_forward.1} parent=1 // pred_check
      _
    $region15: #{lstm_forward.1} parent=1 // pred_check_branch
      %51 = sbr.rel (0) target = $region17
    $region16: #{lstm_forward.1} parent=1 // pred_region
      %s53 = ssub.s32 4096, 4096
      %54 = vsyncadd [#allocation12], %s53
      %s55 = sshll.u32 [#allocation11], 4
      %s56 = int_to_ptr.vmem [resolvable:$true] %s55
      %61 = dma.hbm_to_vmem [thread:$0]  %s3, 4096, %s56, [#allocation12], 256, 256, 16
    $region17: #{lstm_forward.1} parent=1 // pred_fallthru
      _
    // Predicated region
    $region18: #{lstm_forward.1} parent=1 // pred_check
      _
    $region19: #{lstm_forward.1} parent=1 // pred_check_branch
      %63 = sbr.rel (0) target = $region21
    $region20: #{lstm_forward.1} parent=1 // pred_region
      %s65 = ssub.s32 1024, 1024
      %66 = vsyncadd [#allocation12], %s65
      %s67 = sshll.u32 [#allocation13], 4
      %s68 = int_to_ptr.vmem [resolvable:$true] %s67
      %73 = dma.hbm_to_vmem [thread:$0]  %s4, 1024, %s68, [#allocation12], 64, 64, 4
    $region21: #{lstm_forward.1} parent=1 // pred_fallthru
      _
    // Predicated region
    $region22: #{lstm_forward.1} parent=1 // pred_check
      _
    $region23: #{lstm_forward.1} parent=1 // pred_check_branch
      %75 = sbr.rel (0) target = $region25
    $region24: #{lstm_forward.1} parent=1 // pred_region
      %s77 = ssub.s32 16, 16
      %78 = vsyncadd [#allocation15], %s77
      %s80 = sshll.u32 [#allocation14], 4
      %s81 = int_to_ptr.vmem [resolvable:$true] %s80
      %83 = dma.hbm_to_vmem [thread:$0]  %s5, 16, %s81, [#allocation15]
    $region25: #{lstm_forward.1} parent=1 // pred_fallthru
      _
    // Predicated region
    $region26: #{lstm_forward.1} parent=1 // pred_check
      _
    $region27: #{lstm_forward.1} parent=1 // pred_check_branch
      %85 = sbr.rel (0) target = $region29
    $region28: #{lstm_forward.1} parent=1 // pred_region
      %86 = dma.done [#allocation6], 1024
    $region29: #{lstm_forward.1} parent=1 // pred_fallthru
      _
    // Predicated region
    $region30: #{lstm_forward.1} parent=1 // pred_check
      _
    $region31: #{lstm_forward.1} parent=1 // pred_check_branch
      %88 = sbr.rel (0) target = $region33
    $region32: #{lstm_forward.1} parent=1 // pred_region
      %89 = dma.done [#allocation9], 512
    $region33: #{lstm_forward.1} parent=1 // pred_fallthru
      _
    // Predicated region
    $region34: #{lstm_forward.1} parent=1 // pred_check
      _
    $region35: #{lstm_forward.1} parent=1 // pred_check_branch
      %91 = sbr.rel (0) target = $region37
    $region36: #{lstm_forward.1} parent=1 // pred_region
      %92 = dma.done [#allocation9], 64
    $region37: #{lstm_forward.1} parent=1 // pred_fallthru
      _
    // Predicated region
    $region38: #{lstm_forward.1} parent=1 // pred_check
      _
    $region39: #{lstm_forward.1} parent=1 // pred_check_branch
      %94 = sbr.rel (0) target = $region41
    $region40: #{lstm_forward.1} parent=1 // pred_region
      %95 = dma.done [#allocation12], 4096
    $region41: #{lstm_forward.1} parent=1 // pred_fallthru
      _
    // Predicated region
    $region42: #{lstm_forward.1} parent=1 // pred_check
      _
    $region43: #{lstm_forward.1} parent=1 // pred_check_branch
      %97 = sbr.rel (0) target = $region45
    $region44: #{lstm_forward.1} parent=1 // pred_region
      %98 = dma.done [#allocation12], 1024
    $region45: #{lstm_forward.1} parent=1 // pred_fallthru
      _
    // Predicated region
    $region46: #{lstm_forward.1} parent=1 // pred_check
      _
    $region47: #{lstm_forward.1} parent=1 // pred_check_branch
      %100 = sbr.rel (0) target = $region49
    $region48: #{lstm_forward.1} parent=1 // pred_region
      %101 = dma.done [#allocation15], 16
    $region49: #{lstm_forward.1} parent=1 // pred_fallthru
      _
    %p103 = scmp.eq.s32.totalorder 0, 0
    // Predicated region
    $region50: #{lstm_forward.1} parent=1 // pred_check
      %p104 = pneg %p103
    $region51: #{lstm_forward.1} parent=1 // pred_check_branch
      %106 = sbr.rel (%p104) target = $region53
    $region52: #{lstm_forward.1} parent=1 // pred_region
      %107 = vst [vmem:[#allocation2] sm:$0xff] 0.0
      %108 = vst [vmem:[#allocation3] sm:$0xff] 0.0
    $region53: #{lstm_forward.1} parent=1 // pred_fallthru
      _
    %v109 = vld [vmem:[#allocation5] sm:$0xff]
    %v110 = vld [vmem:[#allocation5 + $0x8] sm:$0xff]
    %v111 = vld [vmem:[#allocation5 + $0x10] sm:$0xff]
    %v112 = vld [vmem:[#allocation5 + $0x18] sm:$0xff]
    %v113 = vld [vmem:[#allocation5 + $0x20] sm:$0xff]
    %v114 = vld [vmem:[#allocation5 + $0x28] sm:$0xff]
    %v115 = vld [vmem:[#allocation5 + $0x30] sm:$0xff]
    %v116 = vld [vmem:[#allocation5 + $0x38] sm:$0xff]
    %v117 = vpack.c.bf16 %v110, %v109
    %v118 = vpack.c.bf16 %v112, %v111
    %v119 = vpack.c.bf16 %v114, %v113
    %v120 = vpack.c.bf16 %v116, %v115
    %v121 = vld [vmem:[#allocation8] sm:$0xff]
    %v122 = vld [vmem:[#allocation8 + $0x8] sm:$0xff]
    %v123 = vld [vmem:[#allocation8 + $0x10] sm:$0xff]
    %v124 = vld [vmem:[#allocation8 + $0x18] sm:$0xff]
    %v125 = vld [vmem:[#allocation10] sm:$0xf]
    %v127 = vlaneseq
    %v128 = vshrl.u32 %v127, 7
    %v129 = vsub.s32 0, %v128
    %v130 = vrot.slane %v125, %v129
    %v131 = vlaneseq
    %v132 = vshrl.u32 %v131, 7
    %v133 = vsub.s32 1, %v132
    %v134 = vrot.slane %v125, %v133
    %v135 = vlaneseq
    %v136 = vshrl.u32 %v135, 7
    %v137 = vsub.s32 2, %v136
    %v138 = vrot.slane %v125, %v137
    %v139 = vlaneseq
    %v140 = vshrl.u32 %v139, 7
    %v141 = vsub.s32 3, %v140
    %v142 = vrot.slane %v125, %v141
    %v151 = vunpack.c.l.b16 %v121
    %v152 = vunpack.c.h.b16 %v121
    %v153 = vunpack.c.l.b16 %v122
    %v154 = vunpack.c.h.b16 %v122
    %v155 = vunpack.c.l.b16 %v123
    %v156 = vunpack.c.h.b16 %v123
    %v157 = vunpack.c.l.b16 %v124
    %v158 = vunpack.c.h.b16 %v124
    %v159 = vpack.c.b16 %v155, %v151
    %v160 = vpack.c.b16 %v156, %v152
    %v161 = vpack.c.b16 %v157, %v153
    %v162 = vpack.c.b16 %v158, %v154
    %vm167 = vcmask 130048
    %v169 = vsel %vm167, %v117, 0
    %v172 = vsel %vm167, %v118, 0
    %v175 = vsel %vm167, %v119, 0
    %v178 = vsel %vm167, %v120, 0
    %180 = vmatprep.subr.bf16.mxu0 %v160
    %181 = vmatpush1.bf16.msra.mxu0 %v159
    %182 = vmatprep.subr.bf16.mxu0 0
    %183 = vmatpush1.bf16.msra.mxu0 0
    %184 = vmatprep.subr.bf16.mxu0 0
    %185 = vmatpush1.bf16.msra.mxu0 0
    %186 = vmatprep.subr.bf16.mxu0 0
    %187 = vmatpush1.bf16.msra.mxu0 0
    %188 = vmatprep.subr.bf16.mxu0 0
    %189 = vmatpush1.bf16.msra.mxu0 0
    %190 = vmatprep.subr.bf16.mxu0 0
    %191 = vmatpush1.bf16.msra.mxu0 0
    %192 = vmatprep.subr.bf16.mxu0 0
    %193 = vmatpush1.bf16.msra.mxu0 0
    %194 = vmatprep.subr.bf16.mxu0 0
    %195 = vmatpush1.bf16.msra.mxu0 0
    %196 = vmatprep.subr.bf16.mxu0 0
    %197 = vmatpush1.bf16.msra.mxu0 0
    %198 = vmatprep.subr.bf16.mxu0 0
    %199 = vmatpush1.bf16.msra.mxu0 0
    %200 = vmatprep.subr.bf16.mxu0 0
    %201 = vmatpush1.bf16.msra.mxu0 0
    %202 = vmatprep.subr.bf16.mxu0 0
    %203 = vmatpush1.bf16.msra.mxu0 0
    %204 = vmatprep.subr.bf16.mxu0 0
    %205 = vmatpush1.bf16.msra.mxu0 0
    %206 = vmatprep.subr.bf16.mxu0 0
    %207 = vmatpush1.bf16.msra.mxu0 0
    %208 = vmatprep.subr.bf16.mxu0 0
    %209 = vmatpush1.bf16.msra.mxu0 0
    %210 = vmatprep.subr.bf16.mxu0 0
    %211 = vmatpush1.bf16.msra.mxu0 0
    %212 = vmatprep.mubr.bf16.mxu0 0
    %213 = vmatmul.mubr.bf16.gmra.mrb[0].mxu0 %v169
    %v214 = vpop.f32.mrb[0].mxu0
    %v215 = vadd.f32 %v130, %v214
    %v216 = vpop.f32.mrb[0].mxu0
    %v217 = vadd.f32 %v134, %v216
    %v218 = vpop.f32.mrb[0].mxu0
    %v219 = vadd.f32 %v130, %v218
    %v220 = vpop.f32.mrb[0].mxu0
    %v221 = vadd.f32 %v134, %v220
    %222 = vmatprep.mubr.bf16.mxu0 0
    %223 = vmatmul.mubr.bf16.gmra.mrb[0].mxu0 %v172
    %v224 = vpop.f32.mrb[0].mxu0
    %v225 = vadd.f32 %v130, %v224
    %v226 = vpop.f32.mrb[0].mxu0
    %v227 = vadd.f32 %v134, %v226
    %v228 = vpop.f32.mrb[0].mxu0
    %v229 = vadd.f32 %v130, %v228
    %v230 = vpop.f32.mrb[0].mxu0
    %v231 = vadd.f32 %v134, %v230
    %232 = vmatprep.mubr.bf16.mxu0 0
    %233 = vmatmul.mubr.bf16.gmra.mrb[0].mxu0 %v175
    %v234 = vpop.f32.mrb[0].mxu0
    %v235 = vadd.f32 %v130, %v234
    %v236 = vpop.f32.mrb[0].mxu0
    %v237 = vadd.f32 %v134, %v236
    %v238 = vpop.f32.mrb[0].mxu0
    %v239 = vadd.f32 %v130, %v238
    %v240 = vpop.f32.mrb[0].mxu0
    %v241 = vadd.f32 %v134, %v240
    %242 = vmatprep.mubr.bf16.mxu0 0
    %243 = vmatmul.mubr.bf16.gmra.mrb[0].mxu0 %v178
    %v244 = vpop.f32.mrb[0].mxu0
    %v245 = vadd.f32 %v130, %v244
    %v246 = vpop.f32.mrb[0].mxu0
    %v247 = vadd.f32 %v134, %v246
    %v248 = vpop.f32.mrb[0].mxu0
    %v249 = vadd.f32 %v130, %v248
    %v250 = vpop.f32.mrb[0].mxu0
    %v251 = vadd.f32 %v134, %v250
    %252 = vdwg.mxu0
    %253 = vmatprep.subr.bf16.mxu0 %v162
    %254 = vmatpush1.bf16.msra.mxu0 %v161
    %255 = vmatprep.subr.bf16.mxu0 0
    %256 = vmatpush1.bf16.msra.mxu0 0
    %257 = vmatprep.subr.bf16.mxu0 0
    %258 = vmatpush1.bf16.msra.mxu0 0
    %259 = vmatprep.subr.bf16.mxu0 0
    %260 = vmatpush1.bf16.msra.mxu0 0
    %261 = vmatprep.subr.bf16.mxu0 0
    %262 = vmatpush1.bf16.msra.mxu0 0
    %263 = vmatprep.subr.bf16.mxu0 0
    %264 = vmatpush1.bf16.msra.mxu0 0
    %265 = vmatprep.subr.bf16.mxu0 0
    %266 = vmatpush1.bf16.msra.mxu0 0
    %267 = vmatprep.subr.bf16.mxu0 0
    %268 = vmatpush1.bf16.msra.mxu0 0
    %269 = vmatprep.subr.bf16.mxu0 0
    %270 = vmatpush1.bf16.msra.mxu0 0
    %271 = vmatprep.subr.bf16.mxu0 0
    %272 = vmatpush1.bf16.msra.mxu0 0
    %273 = vmatprep.subr.bf16.mxu0 0
    %274 = vmatpush1.bf16.msra.mxu0 0
    %275 = vmatprep.subr.bf16.mxu0 0
    %276 = vmatpush1.bf16.msra.mxu0 0
    %277 = vmatprep.subr.bf16.mxu0 0
    %278 = vmatpush1.bf16.msra.mxu0 0
    %279 = vmatprep.subr.bf16.mxu0 0
    %280 = vmatpush1.bf16.msra.mxu0 0
    %281 = vmatprep.subr.bf16.mxu0 0
    %282 = vmatpush1.bf16.msra.mxu0 0
    %283 = vmatprep.subr.bf16.mxu0 0
    %284 = vmatpush1.bf16.msra.mxu0 0
    %285 = vmatprep.mubr.bf16.mxu0 0
    %286 = vmatmul.mubr.bf16.gmra.mrb[0].mxu0 %v169
    %v287 = vpop.f32.mrb[0].mxu0
    %v288 = vadd.f32 %v138, %v287
    %v289 = vpop.f32.mrb[0].mxu0
    %v290 = vadd.f32 %v142, %v289
    %v291 = vpop.f32.mrb[0].mxu0
    %v292 = vadd.f32 %v138, %v291
    %v293 = vpop.f32.mrb[0].mxu0
    %v294 = vadd.f32 %v142, %v293
    %295 = vmatprep.mubr.bf16.mxu0 0
    %296 = vmatmul.mubr.bf16.gmra.mrb[0].mxu0 %v172
    %v297 = vpop.f32.mrb[0].mxu0
    %v298 = vadd.f32 %v138, %v297
    %v299 = vpop.f32.mrb[0].mxu0
    %v300 = vadd.f32 %v142, %v299
    %v301 = vpop.f32.mrb[0].mxu0
    %v302 = vadd.f32 %v138, %v301
    %v303 = vpop.f32.mrb[0].mxu0
    %v304 = vadd.f32 %v142, %v303
    %305 = vmatprep.mubr.bf16.mxu0 0
    %306 = vmatmul.mubr.bf16.gmra.mrb[0].mxu0 %v175
    %v307 = vpop.f32.mrb[0].mxu0
    %v308 = vadd.f32 %v138, %v307
    %v309 = vpop.f32.mrb[0].mxu0
    %v310 = vadd.f32 %v142, %v309
    %v311 = vpop.f32.mrb[0].mxu0
    %v312 = vadd.f32 %v138, %v311
    %v313 = vpop.f32.mrb[0].mxu0
    %v314 = vadd.f32 %v142, %v313
    %315 = vmatprep.mubr.bf16.mxu0 0
    %316 = vmatmul.mubr.bf16.gmra.mrb[0].mxu0 %v178
    %v317 = vpop.f32.mrb[0].mxu0
    %v318 = vadd.f32 %v138, %v317
    %v319 = vpop.f32.mrb[0].mxu0
    %v320 = vadd.f32 %v142, %v319
    %v321 = vpop.f32.mrb[0].mxu0
    %v322 = vadd.f32 %v138, %v321
    %v323 = vpop.f32.mrb[0].mxu0
    %v324 = vadd.f32 %v142, %v323
    %325 = vdwg.mxu0
    %326 = vst [vmem:[#allocation4] sm:$0xff] %v215
    %327 = vst [vmem:[#allocation4 + $0x8] sm:$0xff] %v217
    %328 = vst [vmem:[#allocation4 + $0x10] sm:$0xff] %v288
    %329 = vst [vmem:[#allocation4 + $0x18] sm:$0xff] %v290
    %330 = vst [vmem:[#allocation4 + $0x20] sm:$0xff] %v219
    %331 = vst [vmem:[#allocation4 + $0x28] sm:$0xff] %v221
    %332 = vst [vmem:[#allocation4 + $0x30] sm:$0xff] %v292
    %333 = vst [vmem:[#allocation4 + $0x38] sm:$0xff] %v294
    %334 = vst [vmem:[#allocation4 + $0x40] sm:$0xff] %v225
    %335 = vst [vmem:[#allocation4 + $0x48] sm:$0xff] %v227
    %336 = vst [vmem:[#allocation4 + $0x50] sm:$0xff] %v298
    %337 = vst [vmem:[#allocation4 + $0x58] sm:$0xff] %v300
    %338 = vst [vmem:[#allocation4 + $0x60] sm:$0xff] %v229
    %339 = vst [vmem:[#allocation4 + $0x68] sm:$0xff] %v231
    %340 = vst [vmem:[#allocation4 + $0x70] sm:$0xff] %v302
    %341 = vst [vmem:[#allocation4 + $0x78] sm:$0xff] %v304
    %342 = vst [vmem:[#allocation4 + $0x80] sm:$0xff] %v235
    %343 = vst [vmem:[#allocation4 + $0x88] sm:$0xff] %v237
    %344 = vst [vmem:[#allocation4 + $0x90] sm:$0xff] %v308
    %345 = vst [vmem:[#allocation4 + $0x98] sm:$0xff] %v310
    %346 = vst [vmem:[#allocation4 + $0xa0] sm:$0xff] %v239
    %347 = vst [vmem:[#allocation4 + $0xa8] sm:$0xff] %v241
    %348 = vst [vmem:[#allocation4 + $0xb0] sm:$0xff] %v312
    %349 = vst [vmem:[#allocation4 + $0xb8] sm:$0xff] %v314
    %350 = vst [vmem:[#allocation4 + $0xc0] sm:$0xff] %v245
    %351 = vst [vmem:[#allocation4 + $0xc8] sm:$0xff] %v247
    %352 = vst [vmem:[#allocation4 + $0xd0] sm:$0xff] %v318
    %353 = vst [vmem:[#allocation4 + $0xd8] sm:$0xff] %v320
    %354 = vst [vmem:[#allocation4 + $0xe0] sm:$0xff] %v249
    %355 = vst [vmem:[#allocation4 + $0xe8] sm:$0xff] %v251
    %356 = vst [vmem:[#allocation4 + $0xf0] sm:$0xff] %v322
    %357 = vst [vmem:[#allocation4 + $0xf8] sm:$0xff] %v324
    %v358 = vld [vmem:[#allocation11] sm:$0xff]
    %v359 = vld [vmem:[#allocation11 + $0x8] sm:$0xff]
    %v360 = vld [vmem:[#allocation11 + $0x10] sm:$0xff]
    %v361 = vld [vmem:[#allocation11 + $0x18] sm:$0xff]
    %v362 = vld [vmem:[#allocation11 + $0x20] sm:$0xff]
    %v363 = vld [vmem:[#allocation11 + $0x28] sm:$0xff]
    %v364 = vld [vmem:[#allocation11 + $0x30] sm:$0xff]
    %v365 = vld [vmem:[#allocation11 + $0x38] sm:$0xff]
    %v366 = vld [vmem:[#allocation11 + $0x40] sm:$0xff]
    %v367 = vld [vmem:[#allocation11 + $0x48] sm:$0xff]
    %v368 = vld [vmem:[#allocation11 + $0x50] sm:$0xff]
    %v369 = vld [vmem:[#allocation11 + $0x58] sm:$0xff]
    %v370 = vld [vmem:[#allocation11 + $0x60] sm:$0xff]
    %v371 = vld [vmem:[#allocation11 + $0x68] sm:$0xff]
    %v372 = vld [vmem:[#allocation11 + $0x70] sm:$0xff]
    %v373 = vld [vmem:[#allocation11 + $0x78] sm:$0xff]
    %v374 = vld [vmem:[#allocation11 + $0x80] sm:$0xff]
    %v375 = vld [vmem:[#allocation11 + $0x88] sm:$0xff]
    %v376 = vld [vmem:[#allocation11 + $0x90] sm:$0xff]
    %v377 = vld [vmem:[#allocation11 + $0x98] sm:$0xff]
    %v378 = vld [vmem:[#allocation11 + $0xa0] sm:$0xff]
    %v379 = vld [vmem:[#allocation11 + $0xa8] sm:$0xff]
    %v380 = vld [vmem:[#allocation11 + $0xb0] sm:$0xff]
    %v381 = vld [vmem:[#allocation11 + $0xb8] sm:$0xff]
    %v382 = vld [vmem:[#allocation11 + $0xc0] sm:$0xff]
    %v383 = vld [vmem:[#allocation11 + $0xc8] sm:$0xff]
    %v384 = vld [vmem:[#allocation11 + $0xd0] sm:$0xff]
    %v385 = vld [vmem:[#allocation11 + $0xd8] sm:$0xff]
    %v386 = vld [vmem:[#allocation11 + $0xe0] sm:$0xff]
    %v387 = vld [vmem:[#allocation11 + $0xe8] sm:$0xff]
    %v388 = vld [vmem:[#allocation11 + $0xf0] sm:$0xff]
    %v389 = vld [vmem:[#allocation11 + $0xf8] sm:$0xff]
    %v390 = vld [vmem:[#allocation2] sm:$0xff]
    %v391 = vld [vmem:[#allocation3] sm:$0xff]
    %s392 = smul.u32 0, 4
    %s393 = smul.addr %s392, 8
    %s394 = scalar_lea.vmem [#allocation4], %s393
    %v395 = vld [vmem:[%s394] sm:$0xff]
    %v396 = vld [vmem:[%s394 + $0x8] sm:$0xff]
    %v397 = vld [vmem:[%s394 + $0x10] sm:$0xff]
    %v398 = vld [vmem:[%s394 + $0x18] sm:$0xff]
    %v399 = vpack.c.bf16 %v390, %v390
    %v432 = vunpack.c.l.b16 %v358
    %v433 = vunpack.c.h.b16 %v358
    %v434 = vunpack.c.l.b16 %v359
    %v435 = vunpack.c.h.b16 %v359
    %v436 = vunpack.c.l.b16 %v360
    %v437 = vunpack.c.h.b16 %v360
    %v438 = vunpack.c.l.b16 %v361
    %v439 = vunpack.c.h.b16 %v361
    %v440 = vunpack.c.l.b16 %v362
    %v441 = vunpack.c.h.b16 %v362
    %v442 = vunpack.c.l.b16 %v363
    %v443 = vunpack.c.h.b16 %v363
    %v444 = vunpack.c.l.b16 %v364
    %v445 = vunpack.c.h.b16 %v364
    %v446 = vunpack.c.l.b16 %v365
    %v447 = vunpack.c.h.b16 %v365
    %v448 = vunpack.c.l.b16 %v366
    %v449 = vunpack.c.h.b16 %v366
    %v450 = vunpack.c.l.b16 %v367
    %v451 = vunpack.c.h.b16 %v367
    %v452 = vunpack.c.l.b16 %v368
    %v453 = vunpack.c.h.b16 %v368
    %v454 = vunpack.c.l.b16 %v369
    %v455 = vunpack.c.h.b16 %v369
    %v456 = vunpack.c.l.b16 %v370
    %v457 = vunpack.c.h.b16 %v370
    %v458 = vunpack.c.l.b16 %v371
    %v459 = vunpack.c.h.b16 %v371
    %v460 = vunpack.c.l.b16 %v372
    %v461 = vunpack.c.h.b16 %v372
    %v462 = vunpack.c.l.b16 %v373
    %v463 = vunpack.c.h.b16 %v373
    %v464 = vunpack.c.l.b16 %v374
    %v465 = vunpack.c.h.b16 %v374
    %v466 = vunpack.c.l.b16 %v375
    %v467 = vunpack.c.h.b16 %v375
    %v468 = vunpack.c.l.b16 %v376
    %v469 = vunpack.c.h.b16 %v376
    %v470 = vunpack.c.l.b16 %v377
    %v471 = vunpack.c.h.b16 %v377
    %v472 = vunpack.c.l.b16 %v378
    %v473 = vunpack.c.h.b16 %v378
    %v474 = vunpack.c.l.b16 %v379
    %v475 = vunpack.c.h.b16 %v379
    %v476 = vunpack.c.l.b16 %v380
    %v477 = vunpack.c.h.b16 %v380
    %v478 = vunpack.c.l.b16 %v381
    %v479 = vunpack.c.h.b16 %v381
    %v480 = vunpack.c.l.b16 %v382
    %v481 = vunpack.c.h.b16 %v382
    %v482 = vunpack.c.l.b16 %v383
    %v483 = vunpack.c.h.b16 %v383
    %v484 = vunpack.c.l.b16 %v384
    %v485 = vunpack.c.h.b16 %v384
    %v486 = vunpack.c.l.b16 %v385
    %v487 = vunpack.c.h.b16 %v385
    %v488 = vunpack.c.l.b16 %v386
    %v489 = vunpack.c.h.b16 %v386
    %v490 = vunpack.c.l.b16 %v387
    %v491 = vunpack.c.h.b16 %v387
    %v492 = vunpack.c.l.b16 %v388
    %v493 = vunpack.c.h.b16 %v388
    %v494 = vunpack.c.l.b16 %v389
    %v495 = vunpack.c.h.b16 %v389
    %v496 = vpack.c.b16 %v436, %v432
    %v497 = vpack.c.b16 %v437, %v433
    %v498 = vpack.c.b16 %v438, %v434
    %v499 = vpack.c.b16 %v439, %v435
    %v500 = vpack.c.b16 %v444, %v440
    %v501 = vpack.c.b16 %v445, %v441
    %v502 = vpack.c.b16 %v446, %v442
    %v503 = vpack.c.b16 %v447, %v443
    %v504 = vpack.c.b16 %v452, %v448
    %v505 = vpack.c.b16 %v453, %v449
    %v506 = vpack.c.b16 %v454, %v450
    %v507 = vpack.c.b16 %v455, %v451
    %v508 = vpack.c.b16 %v460, %v456
    %v509 = vpack.c.b16 %v461, %v457
    %v510 = vpack.c.b16 %v462, %v458
    %v511 = vpack.c.b16 %v463, %v459
    %v512 = vpack.c.b16 %v468, %v464
    %v513 = vpack.c.b16 %v469, %v465
    %v514 = vpack.c.b16 %v470, %v466
    %v515 = vpack.c.b16 %v471, %v467
    %v516 = vpack.c.b16 %v476, %v472
    %v517 = vpack.c.b16 %v477, %v473
    %v518 = vpack.c.b16 %v478, %v474
    %v519 = vpack.c.b16 %v479, %v475
    %v520 = vpack.c.b16 %v484, %v480
    %v521 = vpack.c.b16 %v485, %v481
    %v522 = vpack.c.b16 %v486, %v482
    %v523 = vpack.c.b16 %v487, %v483
    %v524 = vpack.c.b16 %v492, %v488
    %v525 = vpack.c.b16 %v493, %v489
    %v526 = vpack.c.b16 %v494, %v490
    %v527 = vpack.c.b16 %v495, %v491
    %560 = vmatprep.subr.bf16.mxu0 %v497
    %561 = vmatpush1.bf16.msra.mxu0 %v496
    %562 = vmatprep.subr.bf16.mxu0 %v501
    %563 = vmatpush1.bf16.msra.mxu0 %v500
    %564 = vmatprep.subr.bf16.mxu0 %v505
    %565 = vmatpush1.bf16.msra.mxu0 %v504
    %566 = vmatprep.subr.bf16.mxu0 %v509
    %567 = vmatpush1.bf16.msra.mxu0 %v508
    %568 = vmatprep.subr.bf16.mxu0 %v513
    %569 = vmatpush1.bf16.msra.mxu0 %v512
    %570 = vmatprep.subr.bf16.mxu0 %v517
    %571 = vmatpush1.bf16.msra.mxu0 %v516
    %572 = vmatprep.subr.bf16.mxu0 %v521
    %573 = vmatpush1.bf16.msra.mxu0 %v520
    %574 = vmatprep.subr.bf16.mxu0 %v525
    %575 = vmatpush1.bf16.msra.mxu0 %v524
    %576 = vmatprep.subr.bf16.mxu0 0
    %577 = vmatpush1.bf16.msra.mxu0 0
    %578 = vmatprep.subr.bf16.mxu0 0
    %579 = vmatpush1.bf16.msra.mxu0 0
    %580 = vmatprep.subr.bf16.mxu0 0
    %581 = vmatpush1.bf16.msra.mxu0 0
    %582 = vmatprep.subr.bf16.mxu0 0
    %583 = vmatpush1.bf16.msra.mxu0 0
    %584 = vmatprep.subr.bf16.mxu0 0
    %585 = vmatpush1.bf16.msra.mxu0 0
    %586 = vmatprep.subr.bf16.mxu0 0
    %587 = vmatpush1.bf16.msra.mxu0 0
    %588 = vmatprep.subr.bf16.mxu0 0
    %589 = vmatpush1.bf16.msra.mxu0 0
    %590 = vmatprep.subr.bf16.mxu0 0
    %591 = vmatpush1.bf16.msra.mxu0 0
    %592 = vmatprep.mubr.bf16.mxu0 0
    %593 = vmatmul.mubr.bf16.gmra.mrb[0].mxu0 %v399
    %v594 = vpop.f32.mrb[0].mxu0
    %v595 = vadd.f32 0.0, %v594
    %v596 = vpop.f32.mrb[0].mxu0
    %v597 = vadd.f32 0.0, %v596
    %v598 = vpop.f32.mrb[0].mxu0
    %v599 = vpop.f32.mrb[0].mxu0
    %600 = vdwg.mxu0
    %601 = vmatprep.subr.bf16.mxu0 %v499
    %602 = vmatpush1.bf16.msra.mxu0 %v498
    %603 = vmatprep.subr.bf16.mxu0 %v503
    %604 = vmatpush1.bf16.msra.mxu0 %v502
    %605 = vmatprep.subr.bf16.mxu0 %v507
    %606 = vmatpush1.bf16.msra.mxu0 %v506
    %607 = vmatprep.subr.bf16.mxu0 %v511
    %608 = vmatpush1.bf16.msra.mxu0 %v510
    %609 = vmatprep.subr.bf16.mxu0 %v515
    %610 = vmatpush1.bf16.msra.mxu0 %v514
    %611 = vmatprep.subr.bf16.mxu0 %v519
    %612 = vmatpush1.bf16.msra.mxu0 %v518
    %613 = vmatprep.subr.bf16.mxu0 %v523
    %614 = vmatpush1.bf16.msra.mxu0 %v522
    %615 = vmatprep.subr.bf16.mxu0 %v527
    %616 = vmatpush1.bf16.msra.mxu0 %v526
    %617 = vmatprep.subr.bf16.mxu0 0
    %618 = vmatpush1.bf16.msra.mxu0 0
    %619 = vmatprep.subr.bf16.mxu0 0
    %620 = vmatpush1.bf16.msra.mxu0 0
    %621 = vmatprep.subr.bf16.mxu0 0
    %622 = vmatpush1.bf16.msra.mxu0 0
    %623 = vmatprep.subr.bf16.mxu0 0
    %624 = vmatpush1.bf16.msra.mxu0 0
    %625 = vmatprep.subr.bf16.mxu0 0
    %626 = vmatpush1.bf16.msra.mxu0 0
    %627 = vmatprep.subr.bf16.mxu0 0
    %628 = vmatpush1.bf16.msra.mxu0 0
    %629 = vmatprep.subr.bf16.mxu0 0
    %630 = vmatpush1.bf16.msra.mxu0 0
    %631 = vmatprep.subr.bf16.mxu0 0
    %632 = vmatpush1.bf16.msra.mxu0 0
    %633 = vmatprep.mubr.bf16.mxu0 0
    %634 = vmatmul.mubr.bf16.gmra.mrb[0].mxu0 %v399
    %v635 = vpop.f32.mrb[0].mxu0
    %v636 = vadd.f32 0.0, %v635
    %v637 = vpop.f32.mrb[0].mxu0
    %v638 = vadd.f32 0.0, %v637
    %v639 = vpop.f32.mrb[0].mxu0
    %v640 = vpop.f32.mrb[0].mxu0
    %641 = vdwg.mxu0
    %v642 = vadd.f32 %v395, %v595
    %v643 = vadd.f32 %v396, %v597
    %v644 = vadd.f32 %v397, %v636
    %v645 = vadd.f32 %v398, %v638
    %v646 = vxor.u32 %v642, 2147483648
    %v647 = vmul.f32 %v646, 1.442695
    %v648 = vpow.pop %v647
    %v649 = vadd.f32 %v648, 1.0
    %v650 = vrcp.pop %v649
    %v651 = vmul.f32 1.0, %v650
    %v652 = vxor.u32 %v643, 2147483648
    %v653 = vmul.f32 %v652, 1.442695
    %v654 = vpow.pop %v653
    %v655 = vadd.f32 %v654, 1.0
    %v656 = vrcp.pop %v655
    %v657 = vmul.f32 1.0, %v656
    %v658 = vtanh.pop %v644
    %v659 = vxor.u32 %v645, 2147483648
    %v660 = vmul.f32 %v659, 1.442695
    %v661 = vpow.pop %v660
    %v662 = vadd.f32 %v661, 1.0
    %v663 = vrcp.pop %v662
    %v664 = vmul.f32 1.0, %v663
    %v665 = vmul.f32 %v657, %v391
    %v666 = vmul.f32 %v651, %v658
    %v667 = vadd.f32 %v665, %v666
    %v668 = vtanh.pop %v667
    %v669 = vmul.f32 %v664, %v668
    %s670 = smul.u32 1, 4
    %s671 = smul.addr %s670, 8
    %s672 = scalar_lea.vmem [#allocation4], %s671
    %v673 = vld [vmem:[%s672] sm:$0xff]
    %v674 = vld [vmem:[%s672 + $0x8] sm:$0xff]
    %v675 = vld [vmem:[%s672 + $0x10] sm:$0xff]
    %v676 = vld [vmem:[%s672 + $0x18] sm:$0xff]
    %v677 = vpack.c.bf16 %v669, %v669
    %678 = vmatprep.subr.bf16.mxu0 %v497
    %679 = vmatpush1.bf16.msra.mxu0 %v496
    %680 = vmatprep.subr.bf16.mxu0 %v501
    %681 = vmatpush1.bf16.msra.mxu0 %v500
    %682 = vmatprep.subr.bf16.mxu0 %v505
    %683 = vmatpush1.bf16.msra.mxu0 %v504
    %684 = vmatprep.subr.bf16.mxu0 %v509
    %685 = vmatpush1.bf16.msra.mxu0 %v508
    %686 = vmatprep.subr.bf16.mxu0 %v513
    %687 = vmatpush1.bf16.msra.mxu0 %v512
    %688 = vmatprep.subr.bf16.mxu0 %v517
    %689 = vmatpush1.bf16.msra.mxu0 %v516
    %690 = vmatprep.subr.bf16.mxu0 %v521
    %691 = vmatpush1.bf16.msra.mxu0 %v520
    %692 = vmatprep.subr.bf16.mxu0 %v525
    %693 = vmatpush1.bf16.msra.mxu0 %v524
    %694 = vmatprep.subr.bf16.mxu0 0
    %695 = vmatpush1.bf16.msra.mxu0 0
    %696 = vmatprep.subr.bf16.mxu0 0
    %697 = vmatpush1.bf16.msra.mxu0 0
    %698 = vmatprep.subr.bf16.mxu0 0
    %699 = vmatpush1.bf16.msra.mxu0 0
    %700 = vmatprep.subr.bf16.mxu0 0
    %701 = vmatpush1.bf16.msra.mxu0 0
    %702 = vmatprep.subr.bf16.mxu0 0
    %703 = vmatpush1.bf16.msra.mxu0 0
    %704 = vmatprep.subr.bf16.mxu0 0
    %705 = vmatpush1.bf16.msra.mxu0 0
    %706 = vmatprep.subr.bf16.mxu0 0
    %707 = vmatpush1.bf16.msra.mxu0 0
    %708 = vmatprep.subr.bf16.mxu0 0
    %709 = vmatpush1.bf16.msra.mxu0 0
    %710 = vmatprep.mubr.bf16.mxu0 0
    %711 = vmatmul.mubr.bf16.gmra.mrb[0].mxu0 %v677
    %v712 = vpop.f32.mrb[0].mxu0
    %v713 = vadd.f32 0.0, %v712
    %v714 = vpop.f32.mrb[0].mxu0
    %v715 = vadd.f32 0.0, %v714
    %v716 = vpop.f32.mrb[0].mxu0
    %v717 = vpop.f32.mrb[0].mxu0
    %718 = vdwg.mxu0
    %719 = vmatprep.subr.bf16.mxu0 %v499
    %720 = vmatpush1.bf16.msra.mxu0 %v498
    %721 = vmatprep.subr.bf16.mxu0 %v503
    %722 = vmatpush1.bf16.msra.mxu0 %v502
    %723 = vmatprep.subr.bf16.mxu0 %v507
    %724 = vmatpush1.bf16.msra.mxu0 %v506
    %725 = vmatprep.subr.bf16.mxu0 %v511
    %726 = vmatpush1.bf16.msra.mxu0 %v510
    %727 = vmatprep.subr.bf16.mxu0 %v515
    %728 = vmatpush1.bf16.msra.mxu0 %v514
    %729 = vmatprep.subr.bf16.mxu0 %v519
    %730 = vmatpush1.bf16.msra.mxu0 %v518
    %731 = vmatprep.subr.bf16.mxu0 %v523
    %732 = vmatpush1.bf16.msra.mxu0 %v522
    %733 = vmatprep.subr.bf16.mxu0 %v527
    %734 = vmatpush1.bf16.msra.mxu0 %v526
    %735 = vmatprep.subr.bf16.mxu0 0
    %736 = vmatpush1.bf16.msra.mxu0 0
    %737 = vmatprep.subr.bf16.mxu0 0
    %738 = vmatpush1.bf16.msra.mxu0 0
    %739 = vmatprep.subr.bf16.mxu0 0
    %740 = vmatpush1.bf16.msra.mxu0 0
    %741 = vmatprep.subr.bf16.mxu0 0
    %742 = vmatpush1.bf16.msra.mxu0 0
    %743 = vmatprep.subr.bf16.mxu0 0
    %744 = vmatpush1.bf16.msra.mxu0 0
    %745 = vmatprep.subr.bf16.mxu0 0
    %746 = vmatpush1.bf16.msra.mxu0 0
    %747 = vmatprep.subr.bf16.mxu0 0
    %748 = vmatpush1.bf16.msra.mxu0 0
    %749 = vmatprep.subr.bf16.mxu0 0
    %750 = vmatpush1.bf16.msra.mxu0 0
    %751 = vmatprep.mubr.bf16.mxu0 0
    %752 = vmatmul.mubr.bf16.gmra.mrb[0].mxu0 %v677
    %v753 = vpop.f32.mrb[0].mxu0
    %v754 = vadd.f32 0.0, %v753
    %v755 = vpop.f32.mrb[0].mxu0
    %v756 = vadd.f32 0.0, %v755
    %v757 = vpop.f32.mrb[0].mxu0
    %v758 = vpop.f32.mrb[0].mxu0
    %759 = vdwg.mxu0
    %v760 = vadd.f32 %v673, %v713
    %v761 = vadd.f32 %v674, %v715
    %v762 = vadd.f32 %v675, %v754
    %v763 = vadd.f32 %v676, %v756
    %v764 = vxor.u32 %v760, 2147483648
    %v765 = vmul.f32 %v764, 1.442695
    %v766 = vpow.pop %v765
    %v767 = vadd.f32 %v766, 1.0
    %v768 = vrcp.pop %v767
    %v769 = vmul.f32 1.0, %v768
    %v770 = vxor.u32 %v761, 2147483648
    %v771 = vmul.f32 %v770, 1.442695
    %v772 = vpow.pop %v771
    %v773 = vadd.f32 %v772, 1.0
    %v774 = vrcp.pop %v773
    %v775 = vmul.f32 1.0, %v774
    %v776 = vtanh.pop %v762
    %v777 = vxor.u32 %v763, 2147483648
    %v778 = vmul.f32 %v777, 1.442695
    %v779 = vpow.pop %v778
    %v780 = vadd.f32 %v779, 1.0
    %v781 = vrcp.pop %v780
    %v782 = vmul.f32 1.0, %v781
    %v783 = vmul.f32 %v775, %v667
    %v784 = vmul.f32 %v769, %v776
    %v785 = vadd.f32 %v783, %v784
    %v786 = vtanh.pop %v785
    %v787 = vmul.f32 %v782, %v786
    %s788 = smul.u32 2, 4
    %s789 = smul.addr %s788, 8
    %s790 = scalar_lea.vmem [#allocation4], %s789
    %v791 = vld [vmem:[%s790] sm:$0xff]
    %v792 = vld [vmem:[%s790 + $0x8] sm:$0xff]
    %v793 = vld [vmem:[%s790 + $0x10] sm:$0xff]
    %v794 = vld [vmem:[%s790 + $0x18] sm:$0xff]
    %v795 = vpack.c.bf16 %v787, %v787
    %796 = vmatprep.subr.bf16.mxu0 %v497
    %797 = vmatpush1.bf16.msra.mxu0 %v496
    %798 = vmatprep.subr.bf16.mxu0 %v501
    %799 = vmatpush1.bf16.msra.mxu0 %v500
    %800 = vmatprep.subr.bf16.mxu0 %v505
    %801 = vmatpush1.bf16.msra.mxu0 %v504
    %802 = vmatprep.subr.bf16.mxu0 %v509
    %803 = vmatpush1.bf16.msra.mxu0 %v508
    %804 = vmatprep.subr.bf16.mxu0 %v513
    %805 = vmatpush1.bf16.msra.mxu0 %v512
    %806 = vmatprep.subr.bf16.mxu0 %v517
    %807 = vmatpush1.bf16.msra.mxu0 %v516
    %808 = vmatprep.subr.bf16.mxu0 %v521
    %809 = vmatpush1.bf16.msra.mxu0 %v520
    %810 = vmatprep.subr.bf16.mxu0 %v525
    %811 = vmatpush1.bf16.msra.mxu0 %v524
    %812 = vmatprep.subr.bf16.mxu0 0
    %813 = vmatpush1.bf16.msra.mxu0 0
    %814 = vmatprep.subr.bf16.mxu0 0
    %815 = vmatpush1.bf16.msra.mxu0 0
    %816 = vmatprep.subr.bf16.mxu0 0
    %817 = vmatpush1.bf16.msra.mxu0 0
    %818 = vmatprep.subr.bf16.mxu0 0
    %819 = vmatpush1.bf16.msra.mxu0 0
    %820 = vmatprep.subr.bf16.mxu0 0
    %821 = vmatpush1.bf16.msra.mxu0 0
    %822 = vmatprep.subr.bf16.mxu0 0
    %823 = vmatpush1.bf16.msra.mxu0 0
    %824 = vmatprep.subr.bf16.mxu0 0
    %825 = vmatpush1.bf16.msra.mxu0 0
    %826 = vmatprep.subr.bf16.mxu0 0
    %827 = vmatpush1.bf16.msra.mxu0 0
    %828 = vmatprep.mubr.bf16.mxu0 0
    %829 = vmatmul.mubr.bf16.gmra.mrb[0].mxu0 %v795
    %v830 = vpop.f32.mrb[0].mxu0
    %v831 = vadd.f32 0.0, %v830
    %v832 = vpop.f32.mrb[0].mxu0
    %v833 = vadd.f32 0.0, %v832
    %v834 = vpop.f32.mrb[0].mxu0
    %v835 = vpop.f32.mrb[0].mxu0
    %836 = vdwg.mxu0
    %837 = vmatprep.subr.bf16.mxu0 %v499
    %838 = vmatpush1.bf16.msra.mxu0 %v498
    %839 = vmatprep.subr.bf16.mxu0 %v503
    %840 = vmatpush1.bf16.msra.mxu0 %v502
    %841 = vmatprep.subr.bf16.mxu0 %v507
    %842 = vmatpush1.bf16.msra.mxu0 %v506
    %843 = vmatprep.subr.bf16.mxu0 %v511
    %844 = vmatpush1.bf16.msra.mxu0 %v510
    %845 = vmatprep.subr.bf16.mxu0 %v515
    %846 = vmatpush1.bf16.msra.mxu0 %v514
    %847 = vmatprep.subr.bf16.mxu0 %v519
    %848 = vmatpush1.bf16.msra.mxu0 %v518
    %849 = vmatprep.subr.bf16.mxu0 %v523
    %850 = vmatpush1.bf16.msra.mxu0 %v522
    %851 = vmatprep.subr.bf16.mxu0 %v527
    %852 = vmatpush1.bf16.msra.mxu0 %v526
    %853 = vmatprep.subr.bf16.mxu0 0
    %854 = vmatpush1.bf16.msra.mxu0 0
    %855 = vmatprep.subr.bf16.mxu0 0
    %856 = vmatpush1.bf16.msra.mxu0 0
    %857 = vmatprep.subr.bf16.mxu0 0
    %858 = vmatpush1.bf16.msra.mxu0 0
    %859 = vmatprep.subr.bf16.mxu0 0
    %860 = vmatpush1.bf16.msra.mxu0 0
    %861 = vmatprep.subr.bf16.mxu0 0
    %862 = vmatpush1.bf16.msra.mxu0 0
    %863 = vmatprep.subr.bf16.mxu0 0
    %864 = vmatpush1.bf16.msra.mxu0 0
    %865 = vmatprep.subr.bf16.mxu0 0
    %866 = vmatpush1.bf16.msra.mxu0 0
    %867 = vmatprep.subr.bf16.mxu0 0
    %868 = vmatpush1.bf16.msra.mxu0 0
    %869 = vmatprep.mubr.bf16.mxu0 0
    %870 = vmatmul.mubr.bf16.gmra.mrb[0].mxu0 %v795
    %v871 = vpop.f32.mrb[0].mxu0
    %v872 = vadd.f32 0.0, %v871
    %v873 = vpop.f32.mrb[0].mxu0
    %v874 = vadd.f32 0.0, %v873
    %v875 = vpop.f32.mrb[0].mxu0
    %v876 = vpop.f32.mrb[0].mxu0
    %877 = vdwg.mxu0
    %v878 = vadd.f32 %v791, %v831
    %v879 = vadd.f32 %v792, %v833
    %v880 = vadd.f32 %v793, %v872
    %v881 = vadd.f32 %v794, %v874
    %v882 = vxor.u32 %v878, 2147483648
    %v883 = vmul.f32 %v882, 1.442695
    %v884 = vpow.pop %v883
    %v885 = vadd.f32 %v884, 1.0
    %v886 = vrcp.pop %v885
    %v887 = vmul.f32 1.0, %v886
    %v888 = vxor.u32 %v879, 2147483648
    %v889 = vmul.f32 %v888, 1.442695
    %v890 = vpow.pop %v889
    %v891 = vadd.f32 %v890, 1.0
    %v892 = vrcp.pop %v891
    %v893 = vmul.f32 1.0, %v892
    %v894 = vtanh.pop %v880
    %v895 = vxor.u32 %v881, 2147483648
    %v896 = vmul.f32 %v895, 1.442695
    %v897 = vpow.pop %v896
    %v898 = vadd.f32 %v897, 1.0
    %v899 = vrcp.pop %v898
    %v900 = vmul.f32 1.0, %v899
    %v901 = vmul.f32 %v893, %v785
    %v902 = vmul.f32 %v887, %v894
    %v903 = vadd.f32 %v901, %v902
    %v904 = vtanh.pop %v903
    %v905 = vmul.f32 %v900, %v904
    %s906 = smul.u32 3, 4
    %s907 = smul.addr %s906, 8
    %s908 = scalar_lea.vmem [#allocation4], %s907
    %v909 = vld [vmem:[%s908] sm:$0xff]
    %v910 = vld [vmem:[%s908 + $0x8] sm:$0xff]
    %v911 = vld [vmem:[%s908 + $0x10] sm:$0xff]
    %v912 = vld [vmem:[%s908 + $0x18] sm:$0xff]
    %v913 = vpack.c.bf16 %v905, %v905
    %914 = vmatprep.subr.bf16.mxu0 %v497
    %915 = vmatpush1.bf16.msra.mxu0 %v496
    %916 = vmatprep.subr.bf16.mxu0 %v501
    %917 = vmatpush1.bf16.msra.mxu0 %v500
    %918 = vmatprep.subr.bf16.mxu0 %v505
    %919 = vmatpush1.bf16.msra.mxu0 %v504
    %920 = vmatprep.subr.bf16.mxu0 %v509
    %921 = vmatpush1.bf16.msra.mxu0 %v508
    %922 = vmatprep.subr.bf16.mxu0 %v513
    %923 = vmatpush1.bf16.msra.mxu0 %v512
    %924 = vmatprep.subr.bf16.mxu0 %v517
    %925 = vmatpush1.bf16.msra.mxu0 %v516
    %926 = vmatprep.subr.bf16.mxu0 %v521
    %927 = vmatpush1.bf16.msra.mxu0 %v520
    %928 = vmatprep.subr.bf16.mxu0 %v525
    %929 = vmatpush1.bf16.msra.mxu0 %v524
    %930 = vmatprep.subr.bf16.mxu0 0
    %931 = vmatpush1.bf16.msra.mxu0 0
    %932 = vmatprep.subr.bf16.mxu0 0
    %933 = vmatpush1.bf16.msra.mxu0 0
    %934 = vmatprep.subr.bf16.mxu0 0
    %935 = vmatpush1.bf16.msra.mxu0 0
    %936 = vmatprep.subr.bf16.mxu0 0
    %937 = vmatpush1.bf16.msra.mxu0 0
    %938 = vmatprep.subr.bf16.mxu0 0
    %939 = vmatpush1.bf16.msra.mxu0 0
    %940 = vmatprep.subr.bf16.mxu0 0
    %941 = vmatpush1.bf16.msra.mxu0 0
    %942 = vmatprep.subr.bf16.mxu0 0
    %943 = vmatpush1.bf16.msra.mxu0 0
    %944 = vmatprep.subr.bf16.mxu0 0
    %945 = vmatpush1.bf16.msra.mxu0 0
    %946 = vmatprep.mubr.bf16.mxu0 0
    %947 = vmatmul.mubr.bf16.gmra.mrb[0].mxu0 %v913
    %v948 = vpop.f32.mrb[0].mxu0
    %v949 = vadd.f32 0.0, %v948
    %v950 = vpop.f32.mrb[0].mxu0
    %v951 = vadd.f32 0.0, %v950
    %v952 = vpop.f32.mrb[0].mxu0
    %v953 = vpop.f32.mrb[0].mxu0
    %954 = vdwg.mxu0
    %955 = vmatprep.subr.bf16.mxu0 %v499
    %956 = vmatpush1.bf16.msra.mxu0 %v498
    %957 = vmatprep.subr.bf16.mxu0 %v503
    %958 = vmatpush1.bf16.msra.mxu0 %v502
    %959 = vmatprep.subr.bf16.mxu0 %v507
    %960 = vmatpush1.bf16.msra.mxu0 %v506
    %961 = vmatprep.subr.bf16.mxu0 %v511
    %962 = vmatpush1.bf16.msra.mxu0 %v510
    %963 = vmatprep.subr.bf16.mxu0 %v515
    %964 = vmatpush1.bf16.msra.mxu0 %v514
    %965 = vmatprep.subr.bf16.mxu0 %v519
    %966 = vmatpush1.bf16.msra.mxu0 %v518
    %967 = vmatprep.subr.bf16.mxu0 %v523
    %968 = vmatpush1.bf16.msra.mxu0 %v522
    %969 = vmatprep.subr.bf16.mxu0 %v527
    %970 = vmatpush1.bf16.msra.mxu0 %v526
    %971 = vmatprep.subr.bf16.mxu0 0
    %972 = vmatpush1.bf16.msra.mxu0 0
    %973 = vmatprep.subr.bf16.mxu0 0
    %974 = vmatpush1.bf16.msra.mxu0 0
    %975 = vmatprep.subr.bf16.mxu0 0
    %976 = vmatpush1.bf16.msra.mxu0 0
    %977 = vmatprep.subr.bf16.mxu0 0
    %978 = vmatpush1.bf16.msra.mxu0 0
    %979 = vmatprep.subr.bf16.mxu0 0
    %980 = vmatpush1.bf16.msra.mxu0 0
    %981 = vmatprep.subr.bf16.mxu0 0
    %982 = vmatpush1.bf16.msra.mxu0 0
    %983 = vmatprep.subr.bf16.mxu0 0
    %984 = vmatpush1.bf16.msra.mxu0 0
    %985 = vmatprep.subr.bf16.mxu0 0
    %986 = vmatpush1.bf16.msra.mxu0 0
    %987 = vmatprep.mubr.bf16.mxu0 0
    %988 = vmatmul.mubr.bf16.gmra.mrb[0].mxu0 %v913
    %v989 = vpop.f32.mrb[0].mxu0
    %v990 = vadd.f32 0.0, %v989
    %v991 = vpop.f32.mrb[0].mxu0
    %v992 = vadd.f32 0.0, %v991
    %v993 = vpop.f32.mrb[0].mxu0
    %v994 = vpop.f32.mrb[0].mxu0
    %995 = vdwg.mxu0
    %v996 = vadd.f32 %v909, %v949
    %v997 = vadd.f32 %v910, %v951
    %v998 = vadd.f32 %v911, %v990
    %v999 = vadd.f32 %v912, %v992
    %v1000 = vxor.u32 %v996, 2147483648
    %v1001 = vmul.f32 %v1000, 1.442695
    %v1002 = vpow.pop %v1001
    %v1003 = vadd.f32 %v1002, 1.0
    %v1004 = vrcp.pop %v1003
    %v1005 = vmul.f32 1.0, %v1004
    %v1006 = vxor.u32 %v997, 2147483648
    %v1007 = vmul.f32 %v1006, 1.442695
    %v1008 = vpow.pop %v1007
    %v1009 = vadd.f32 %v1008, 1.0
    %v1010 = vrcp.pop %v1009
    %v1011 = vmul.f32 1.0, %v1010
    %v1012 = vtanh.pop %v998
    %v1013 = vxor.u32 %v999, 2147483648
    %v1014 = vmul.f32 %v1013, 1.442695
    %v1015 = vpow.pop %v1014
    %v1016 = vadd.f32 %v1015, 1.0
    %v1017 = vrcp.pop %v1016
    %v1018 = vmul.f32 1.0, %v1017
    %v1019 = vmul.f32 %v1011, %v903
    %v1020 = vmul.f32 %v1005, %v1012
    %v1021 = vadd.f32 %v1019, %v1020
    %v1022 = vtanh.pop %v1021
    %v1023 = vmul.f32 %v1018, %v1022
    %s1024 = smul.u32 4, 4
    %s1025 = smul.addr %s1024, 8
    %s1026 = scalar_lea.vmem [#allocation4], %s1025
    %v1027 = vld [vmem:[%s1026] sm:$0xff]
    %v1028 = vld [vmem:[%s1026 + $0x8] sm:$0xff]
    %v1029 = vld [vmem:[%s1026 + $0x10] sm:$0xff]
    %v1030 = vld [vmem:[%s1026 + $0x18] sm:$0xff]
    %v1031 = vpack.c.bf16 %v1023, %v1023
    %1032 = vmatprep.subr.bf16.mxu0 %v497
    %1033 = vmatpush1.bf16.msra.mxu0 %v496
    %1034 = vmatprep.subr.bf16.mxu0 %v501
    %1035 = vmatpush1.bf16.msra.mxu0 %v500
    %1036 = vmatprep.subr.bf16.mxu0 %v505
    %1037 = vmatpush1.bf16.msra.mxu0 %v504
    %1038 = vmatprep.subr.bf16.mxu0 %v509
    %1039 = vmatpush1.bf16.msra.mxu0 %v508
    %1040 = vmatprep.subr.bf16.mxu0 %v513
    %1041 = vmatpush1.bf16.msra.mxu0 %v512
    %1042 = vmatprep.subr.bf16.mxu0 %v517
    %1043 = vmatpush1.bf16.msra.mxu0 %v516
    %1044 = vmatprep.subr.bf16.mxu0 %v521
    %1045 = vmatpush1.bf16.msra.mxu0 %v520
    %1046 = vmatprep.subr.bf16.mxu0 %v525
    %1047 = vmatpush1.bf16.msra.mxu0 %v524
    %1048 = vmatprep.subr.bf16.mxu0 0
    %1049 = vmatpush1.bf16.msra.mxu0 0
    %1050 = vmatprep.subr.bf16.mxu0 0
    %1051 = vmatpush1.bf16.msra.mxu0 0
    %1052 = vmatprep.subr.bf16.mxu0 0
    %1053 = vmatpush1.bf16.msra.mxu0 0
    %1054 = vmatprep.subr.bf16.mxu0 0
    %1055 = vmatpush1.bf16.msra.mxu0 0
    %1056 = vmatprep.subr.bf16.mxu0 0
    %1057 = vmatpush1.bf16.msra.mxu0 0
    %1058 = vmatprep.subr.bf16.mxu0 0
    %1059 = vmatpush1.bf16.msra.mxu0 0
    %1060 = vmatprep.subr.bf16.mxu0 0
    %1061 = vmatpush1.bf16.msra.mxu0 0
    %1062 = vmatprep.subr.bf16.mxu0 0
    %1063 = vmatpush1.bf16.msra.mxu0 0
    %1064 = vmatprep.mubr.bf16.mxu0 0
    %1065 = vmatmul.mubr.bf16.gmra.mrb[0].mxu0 %v1031
    %v1066 = vpop.f32.mrb[0].mxu0
    %v1067 = vadd.f32 0.0, %v1066
    %v1068 = vpop.f32.mrb[0].mxu0
    %v1069 = vadd.f32 0.0, %v1068
    %v1070 = vpop.f32.mrb[0].mxu0
    %v1071 = vpop.f32.mrb[0].mxu0
    %1072 = vdwg.mxu0
    %1073 = vmatprep.subr.bf16.mxu0 %v499
    %1074 = vmatpush1.bf16.msra.mxu0 %v498
    %1075 = vmatprep.subr.bf16.mxu0 %v503
    %1076 = vmatpush1.bf16.msra.mxu0 %v502
    %1077 = vmatprep.subr.bf16.mxu0 %v507
    %1078 = vmatpush1.bf16.msra.mxu0 %v506
    %1079 = vmatprep.subr.bf16.mxu0 %v511
    %1080 = vmatpush1.bf16.msra.mxu0 %v510
    %1081 = vmatprep.subr.bf16.mxu0 %v515
    %1082 = vmatpush1.bf16.msra.mxu0 %v514
    %1083 = vmatprep.subr.bf16.mxu0 %v519
    %1084 = vmatpush1.bf16.msra.mxu0 %v518
    %1085 = vmatprep.subr.bf16.mxu0 %v523
    %1086 = vmatpush1.bf16.msra.mxu0 %v522
    %1087 = vmatprep.subr.bf16.mxu0 %v527
    %1088 = vmatpush1.bf16.msra.mxu0 %v526
    %1089 = vmatprep.subr.bf16.mxu0 0
    %1090 = vmatpush1.bf16.msra.mxu0 0
    %1091 = vmatprep.subr.bf16.mxu0 0
    %1092 = vmatpush1.bf16.msra.mxu0 0
    %1093 = vmatprep.subr.bf16.mxu0 0
    %1094 = vmatpush1.bf16.msra.mxu0 0
    %1095 = vmatprep.subr.bf16.mxu0 0
    %1096 = vmatpush1.bf16.msra.mxu0 0
    %1097 = vmatprep.subr.bf16.mxu0 0
    %1098 = vmatpush1.bf16.msra.mxu0 0
    %1099 = vmatprep.subr.bf16.mxu0 0
    %1100 = vmatpush1.bf16.msra.mxu0 0
    %1101 = vmatprep.subr.bf16.mxu0 0
    %1102 = vmatpush1.bf16.msra.mxu0 0
    %1103 = vmatprep.subr.bf16.mxu0 0
    %1104 = vmatpush1.bf16.msra.mxu0 0
    %1105 = vmatprep.mubr.bf16.mxu0 0
    %1106 = vmatmul.mubr.bf16.gmra.mrb[0].mxu0 %v1031
    %v1107 = vpop.f32.mrb[0].mxu0
    %v1108 = vadd.f32 0.0, %v1107
    %v1109 = vpop.f32.mrb[0].mxu0
    %v1110 = vadd.f32 0.0, %v1109
    %v1111 = vpop.f32.mrb[0].mxu0
    %v1112 = vpop.f32.mrb[0].mxu0
    %1113 = vdwg.mxu0
    %v1114 = vadd.f32 %v1027, %v1067
    %v1115 = vadd.f32 %v1028, %v1069
    %v1116 = vadd.f32 %v1029, %v1108
    %v1117 = vadd.f32 %v1030, %v1110
    %v1118 = vxor.u32 %v1114, 2147483648
    %v1119 = vmul.f32 %v1118, 1.442695
    %v1120 = vpow.pop %v1119
    %v1121 = vadd.f32 %v1120, 1.0
    %v1122 = vrcp.pop %v1121
    %v1123 = vmul.f32 1.0, %v1122
    %v1124 = vxor.u32 %v1115, 2147483648
    %v1125 = vmul.f32 %v1124, 1.442695
    %v1126 = vpow.pop %v1125
    %v1127 = vadd.f32 %v1126, 1.0
    %v1128 = vrcp.pop %v1127
    %v1129 = vmul.f32 1.0, %v1128
    %v1130 = vtanh.pop %v1116
    %v1131 = vxor.u32 %v1117, 2147483648
    %v1132 = vmul.f32 %v1131, 1.442695
    %v1133 = vpow.pop %v1132
    %v1134 = vadd.f32 %v1133, 1.0
    %v1135 = vrcp.pop %v1134
    %v1136 = vmul.f32 1.0, %v1135
    %v1137 = vmul.f32 %v1129, %v1021
    %v1138 = vmul.f32 %v1123, %v1130
    %v1139 = vadd.f32 %v1137, %v1138
    %v1140 = vtanh.pop %v1139
    %v1141 = vmul.f32 %v1136, %v1140
    %s1142 = smul.u32 5, 4
    %s1143 = smul.addr %s1142, 8
    %s1144 = scalar_lea.vmem [#allocation4], %s1143
    %v1145 = vld [vmem:[%s1144] sm:$0xff]
    %v1146 = vld [vmem:[%s1144 + $0x8] sm:$0xff]
    %v1147 = vld [vmem:[%s1144 + $0x10] sm:$0xff]
    %v1148 = vld [vmem:[%s1144 + $0x18] sm:$0xff]
    %v1149 = vpack.c.bf16 %v1141, %v1141
    %1150 = vmatprep.subr.bf16.mxu0 %v497
    %1151 = vmatpush1.bf16.msra.mxu0 %v496
    %1152 = vmatprep.subr.bf16.mxu0 %v501
    %1153 = vmatpush1.bf16.msra.mxu0 %v500
    %1154 = vmatprep.subr.bf16.mxu0 %v505
    %1155 = vmatpush1.bf16.msra.mxu0 %v504
    %1156 = vmatprep.subr.bf16.mxu0 %v509
    %1157 = vmatpush1.bf16.msra.mxu0 %v508
    %1158 = vmatprep.subr.bf16.mxu0 %v513
    %1159 = vmatpush1.bf16.msra.mxu0 %v512
    %1160 = vmatprep.subr.bf16.mxu0 %v517
    %1161 = vmatpush1.bf16.msra.mxu0 %v516
    %1162 = vmatprep.subr.bf16.mxu0 %v521
    %1163 = vmatpush1.bf16.msra.mxu0 %v520
    %1164 = vmatprep.subr.bf16.mxu0 %v525
    %1165 = vmatpush1.bf16.msra.mxu0 %v524
    %1166 = vmatprep.subr.bf16.mxu0 0
    %1167 = vmatpush1.bf16.msra.mxu0 0
    %1168 = vmatprep.subr.bf16.mxu0 0
    %1169 = vmatpush1.bf16.msra.mxu0 0
    %1170 = vmatprep.subr.bf16.mxu0 0
    %1171 = vmatpush1.bf16.msra.mxu0 0
    %1172 = vmatprep.subr.bf16.mxu0 0
    %1173 = vmatpush1.bf16.msra.mxu0 0
    %1174 = vmatprep.subr.bf16.mxu0 0
    %1175 = vmatpush1.bf16.msra.mxu0 0
    %1176 = vmatprep.subr.bf16.mxu0 0
    %1177 = vmatpush1.bf16.msra.mxu0 0
    %1178 = vmatprep.subr.bf16.mxu0 0
    %1179 = vmatpush1.bf16.msra.mxu0 0
    %1180 = vmatprep.subr.bf16.mxu0 0
    %1181 = vmatpush1.bf16.msra.mxu0 0
    %1182 = vmatprep.mubr.bf16.mxu0 0
    %1183 = vmatmul.mubr.bf16.gmra.mrb[0].mxu0 %v1149
    %v1184 = vpop.f32.mrb[0].mxu0
    %v1185 = vadd.f32 0.0, %v1184
    %v1186 = vpop.f32.mrb[0].mxu0
    %v1187 = vadd.f32 0.0, %v1186
    %v1188 = vpop.f32.mrb[0].mxu0
    %v1189 = vpop.f32.mrb[0].mxu0
    %1190 = vdwg.mxu0
    %1191 = vmatprep.subr.bf16.mxu0 %v499
    %1192 = vmatpush1.bf16.msra.mxu0 %v498
    %1193 = vmatprep.subr.bf16.mxu0 %v503
    %1194 = vmatpush1.bf16.msra.mxu0 %v502
    %1195 = vmatprep.subr.bf16.mxu0 %v507
    %1196 = vmatpush1.bf16.msra.mxu0 %v506
    %1197 = vmatprep.subr.bf16.mxu0 %v511
    %1198 = vmatpush1.bf16.msra.mxu0 %v510
    %1199 = vmatprep.subr.bf16.mxu0 %v515
    %1200 = vmatpush1.bf16.msra.mxu0 %v514
    %1201 = vmatprep.subr.bf16.mxu0 %v519
    %1202 = vmatpush1.bf16.msra.mxu0 %v518
    %1203 = vmatprep.subr.bf16.mxu0 %v523
    %1204 = vmatpush1.bf16.msra.mxu0 %v522
    %1205 = vmatprep.subr.bf16.mxu0 %v527
    %1206 = vmatpush1.bf16.msra.mxu0 %v526
    %1207 = vmatprep.subr.bf16.mxu0 0
    %1208 = vmatpush1.bf16.msra.mxu0 0
    %1209 = vmatprep.subr.bf16.mxu0 0
    %1210 = vmatpush1.bf16.msra.mxu0 0
    %1211 = vmatprep.subr.bf16.mxu0 0
    %1212 = vmatpush1.bf16.msra.mxu0 0
    %1213 = vmatprep.subr.bf16.mxu0 0
    %1214 = vmatpush1.bf16.msra.mxu0 0
    %1215 = vmatprep.subr.bf16.mxu0 0
    %1216 = vmatpush1.bf16.msra.mxu0 0
    %1217 = vmatprep.subr.bf16.mxu0 0
    %1218 = vmatpush1.bf16.msra.mxu0 0
    %1219 = vmatprep.subr.bf16.mxu0 0
    %1220 = vmatpush1.bf16.msra.mxu0 0
    %1221 = vmatprep.subr.bf16.mxu0 0
    %1222 = vmatpush1.bf16.msra.mxu0 0
    %1223 = vmatprep.mubr.bf16.mxu0 0
    %1224 = vmatmul.mubr.bf16.gmra.mrb[0].mxu0 %v1149
    %v1225 = vpop.f32.mrb[0].mxu0
    %v1226 = vadd.f32 0.0, %v1225
    %v1227 = vpop.f32.mrb[0].mxu0
    %v1228 = vadd.f32 0.0, %v1227
    %v1229 = vpop.f32.mrb[0].mxu0
    %v1230 = vpop.f32.mrb[0].mxu0
    %1231 = vdwg.mxu0
    %v1232 = vadd.f32 %v1145, %v1185
    %v1233 = vadd.f32 %v1146, %v1187
    %v1234 = vadd.f32 %v1147, %v1226
    %v1235 = vadd.f32 %v1148, %v1228
    %v1236 = vxor.u32 %v1232, 2147483648
    %v1237 = vmul.f32 %v1236, 1.442695
    %v1238 = vpow.pop %v1237
    %v1239 = vadd.f32 %v1238, 1.0
    %v1240 = vrcp.pop %v1239
    %v1241 = vmul.f32 1.0, %v1240
    %v1242 = vxor.u32 %v1233, 2147483648
    %v1243 = vmul.f32 %v1242, 1.442695
    %v1244 = vpow.pop %v1243
    %v1245 = vadd.f32 %v1244, 1.0
    %v1246 = vrcp.pop %v1245
    %v1247 = vmul.f32 1.0, %v1246
    %v1248 = vtanh.pop %v1234
    %v1249 = vxor.u32 %v1235, 2147483648
    %v1250 = vmul.f32 %v1249, 1.442695
    %v1251 = vpow.pop %v1250
    %v1252 = vadd.f32 %v1251, 1.0
    %v1253 = vrcp.pop %v1252
    %v1254 = vmul.f32 1.0, %v1253
    %v1255 = vmul.f32 %v1247, %v1139
    %v1256 = vmul.f32 %v1241, %v1248
    %v1257 = vadd.f32 %v1255, %v1256
    %v1258 = vtanh.pop %v1257
    %v1259 = vmul.f32 %v1254, %v1258
    %s1260 = smul.u32 6, 4
    %s1261 = smul.addr %s1260, 8
    %s1262 = scalar_lea.vmem [#allocation4], %s1261
    %v1263 = vld [vmem:[%s1262] sm:$0xff]
    %v1264 = vld [vmem:[%s1262 + $0x8] sm:$0xff]
    %v1265 = vld [vmem:[%s1262 + $0x10] sm:$0xff]
    %v1266 = vld [vmem:[%s1262 + $0x18] sm:$0xff]
    %v1267 = vpack.c.bf16 %v1259, %v1259
    %1268 = vmatprep.subr.bf16.mxu0 %v497
    %1269 = vmatpush1.bf16.msra.mxu0 %v496
    %1270 = vmatprep.subr.bf16.mxu0 %v501
    %1271 = vmatpush1.bf16.msra.mxu0 %v500
    %1272 = vmatprep.subr.bf16.mxu0 %v505
    %1273 = vmatpush1.bf16.msra.mxu0 %v504
    %1274 = vmatprep.subr.bf16.mxu0 %v509
    %1275 = vmatpush1.bf16.msra.mxu0 %v508
    %1276 = vmatprep.subr.bf16.mxu0 %v513
    %1277 = vmatpush1.bf16.msra.mxu0 %v512
    %1278 = vmatprep.subr.bf16.mxu0 %v517
    %1279 = vmatpush1.bf16.msra.mxu0 %v516
    %1280 = vmatprep.subr.bf16.mxu0 %v521
    %1281 = vmatpush1.bf16.msra.mxu0 %v520
    %1282 = vmatprep.subr.bf16.mxu0 %v525
    %1283 = vmatpush1.bf16.msra.mxu0 %v524
    %1284 = vmatprep.subr.bf16.mxu0 0
    %1285 = vmatpush1.bf16.msra.mxu0 0
    %1286 = vmatprep.subr.bf16.mxu0 0
    %1287 = vmatpush1.bf16.msra.mxu0 0
    %1288 = vmatprep.subr.bf16.mxu0 0
    %1289 = vmatpush1.bf16.msra.mxu0 0
    %1290 = vmatprep.subr.bf16.mxu0 0
    %1291 = vmatpush1.bf16.msra.mxu0 0
    %1292 = vmatprep.subr.bf16.mxu0 0
    %1293 = vmatpush1.bf16.msra.mxu0 0
    %1294 = vmatprep.subr.bf16.mxu0 0
    %1295 = vmatpush1.bf16.msra.mxu0 0
    %1296 = vmatprep.subr.bf16.mxu0 0
    %1297 = vmatpush1.bf16.msra.mxu0 0
    %1298 = vmatprep.subr.bf16.mxu0 0
    %1299 = vmatpush1.bf16.msra.mxu0 0
    %1300 = vmatprep.mubr.bf16.mxu0 0
    %1301 = vmatmul.mubr.bf16.gmra.mrb[0].mxu0 %v1267
    %v1302 = vpop.f32.mrb[0].mxu0
    %v1303 = vadd.f32 0.0, %v1302
    %v1304 = vpop.f32.mrb[0].mxu0
    %v1305 = vadd.f32 0.0, %v1304
    %v1306 = vpop.f32.mrb[0].mxu0
    %v1307 = vpop.f32.mrb[0].mxu0
    %1308 = vdwg.mxu0
    %1309 = vmatprep.subr.bf16.mxu0 %v499
    %1310 = vmatpush1.bf16.msra.mxu0 %v498
    %1311 = vmatprep.subr.bf16.mxu0 %v503
    %1312 = vmatpush1.bf16.msra.mxu0 %v502
    %1313 = vmatprep.subr.bf16.mxu0 %v507
    %1314 = vmatpush1.bf16.msra.mxu0 %v506
    %1315 = vmatprep.subr.bf16.mxu0 %v511
    %1316 = vmatpush1.bf16.msra.mxu0 %v510
    %1317 = vmatprep.subr.bf16.mxu0 %v515
    %1318 = vmatpush1.bf16.msra.mxu0 %v514
    %1319 = vmatprep.subr.bf16.mxu0 %v519
    %1320 = vmatpush1.bf16.msra.mxu0 %v518
    %1321 = vmatprep.subr.bf16.mxu0 %v523
    %1322 = vmatpush1.bf16.msra.mxu0 %v522
    %1323 = vmatprep.subr.bf16.mxu0 %v527
    %1324 = vmatpush1.bf16.msra.mxu0 %v526
    %1325 = vmatprep.subr.bf16.mxu0 0
    %1326 = vmatpush1.bf16.msra.mxu0 0
    %1327 = vmatprep.subr.bf16.mxu0 0
    %1328 = vmatpush1.bf16.msra.mxu0 0
    %1329 = vmatprep.subr.bf16.mxu0 0
    %1330 = vmatpush1.bf16.msra.mxu0 0
    %1331 = vmatprep.subr.bf16.mxu0 0
    %1332 = vmatpush1.bf16.msra.mxu0 0
    %1333 = vmatprep.subr.bf16.mxu0 0
    %1334 = vmatpush1.bf16.msra.mxu0 0
    %1335 = vmatprep.subr.bf16.mxu0 0
    %1336 = vmatpush1.bf16.msra.mxu0 0
    %1337 = vmatprep.subr.bf16.mxu0 0
    %1338 = vmatpush1.bf16.msra.mxu0 0
    %1339 = vmatprep.subr.bf16.mxu0 0
    %1340 = vmatpush1.bf16.msra.mxu0 0
    %1341 = vmatprep.mubr.bf16.mxu0 0
    %1342 = vmatmul.mubr.bf16.gmra.mrb[0].mxu0 %v1267
    %v1343 = vpop.f32.mrb[0].mxu0
    %v1344 = vadd.f32 0.0, %v1343
    %v1345 = vpop.f32.mrb[0].mxu0
    %v1346 = vadd.f32 0.0, %v1345
    %v1347 = vpop.f32.mrb[0].mxu0
    %v1348 = vpop.f32.mrb[0].mxu0
    %1349 = vdwg.mxu0
    %v1350 = vadd.f32 %v1263, %v1303
    %v1351 = vadd.f32 %v1264, %v1305
    %v1352 = vadd.f32 %v1265, %v1344
    %v1353 = vadd.f32 %v1266, %v1346
    %v1354 = vxor.u32 %v1350, 2147483648
    %v1355 = vmul.f32 %v1354, 1.442695
    %v1356 = vpow.pop %v1355
    %v1357 = vadd.f32 %v1356, 1.0
    %v1358 = vrcp.pop %v1357
    %v1359 = vmul.f32 1.0, %v1358
    %v1360 = vxor.u32 %v1351, 2147483648
    %v1361 = vmul.f32 %v1360, 1.442695
    %v1362 = vpow.pop %v1361
    %v1363 = vadd.f32 %v1362, 1.0
    %v1364 = vrcp.pop %v1363
    %v1365 = vmul.f32 1.0, %v1364
    %v1366 = vtanh.pop %v1352
    %v1367 = vxor.u32 %v1353, 2147483648
    %v1368 = vmul.f32 %v1367, 1.442695
    %v1369 = vpow.pop %v1368
    %v1370 = vadd.f32 %v1369, 1.0
    %v1371 = vrcp.pop %v1370
    %v1372 = vmul.f32 1.0, %v1371
    %v1373 = vmul.f32 %v1365, %v1257
    %v1374 = vmul.f32 %v1359, %v1366
    %v1375 = vadd.f32 %v1373, %v1374
    %v1376 = vtanh.pop %v1375
    %v1377 = vmul.f32 %v1372, %v1376
    %s1378 = smul.u32 7, 4
    %s1379 = smul.addr %s1378, 8
    %s1380 = scalar_lea.vmem [#allocation4], %s1379
    %v1381 = vld [vmem:[%s1380] sm:$0xff]
    %v1382 = vld [vmem:[%s1380 + $0x8] sm:$0xff]
    %v1383 = vld [vmem:[%s1380 + $0x10] sm:$0xff]
    %v1384 = vld [vmem:[%s1380 + $0x18] sm:$0xff]
    %v1385 = vpack.c.bf16 %v1377, %v1377
    %1386 = vmatprep.subr.bf16.mxu0 %v497
    %1387 = vmatpush1.bf16.msra.mxu0 %v496
    %1388 = vmatprep.subr.bf16.mxu0 %v501
    %1389 = vmatpush1.bf16.msra.mxu0 %v500
    %1390 = vmatprep.subr.bf16.mxu0 %v505
    %1391 = vmatpush1.bf16.msra.mxu0 %v504
    %1392 = vmatprep.subr.bf16.mxu0 %v509
    %1393 = vmatpush1.bf16.msra.mxu0 %v508
    %1394 = vmatprep.subr.bf16.mxu0 %v513
    %1395 = vmatpush1.bf16.msra.mxu0 %v512
    %1396 = vmatprep.subr.bf16.mxu0 %v517
    %1397 = vmatpush1.bf16.msra.mxu0 %v516
    %1398 = vmatprep.subr.bf16.mxu0 %v521
    %1399 = vmatpush1.bf16.msra.mxu0 %v520
    %1400 = vmatprep.subr.bf16.mxu0 %v525
    %1401 = vmatpush1.bf16.msra.mxu0 %v524
    %1402 = vmatprep.subr.bf16.mxu0 0
    %1403 = vmatpush1.bf16.msra.mxu0 0
    %1404 = vmatprep.subr.bf16.mxu0 0
    %1405 = vmatpush1.bf16.msra.mxu0 0
    %1406 = vmatprep.subr.bf16.mxu0 0
    %1407 = vmatpush1.bf16.msra.mxu0 0
    %1408 = vmatprep.subr.bf16.mxu0 0
    %1409 = vmatpush1.bf16.msra.mxu0 0
    %1410 = vmatprep.subr.bf16.mxu0 0
    %1411 = vmatpush1.bf16.msra.mxu0 0
    %1412 = vmatprep.subr.bf16.mxu0 0
    %1413 = vmatpush1.bf16.msra.mxu0 0
    %1414 = vmatprep.subr.bf16.mxu0 0
    %1415 = vmatpush1.bf16.msra.mxu0 0
    %1416 = vmatprep.subr.bf16.mxu0 0
    %1417 = vmatpush1.bf16.msra.mxu0 0
    %1418 = vmatprep.mubr.bf16.mxu0 0
    %1419 = vmatmul.mubr.bf16.gmra.mrb[0].mxu0 %v1385
    %v1420 = vpop.f32.mrb[0].mxu0
    %v1421 = vadd.f32 0.0, %v1420
    %v1422 = vpop.f32.mrb[0].mxu0
    %v1423 = vadd.f32 0.0, %v1422
    %v1424 = vpop.f32.mrb[0].mxu0
    %v1425 = vpop.f32.mrb[0].mxu0
    %1426 = vdwg.mxu0
    %1427 = vmatprep.subr.bf16.mxu0 %v499
    %1428 = vmatpush1.bf16.msra.mxu0 %v498
    %1429 = vmatprep.subr.bf16.mxu0 %v503
    %1430 = vmatpush1.bf16.msra.mxu0 %v502
    %1431 = vmatprep.subr.bf16.mxu0 %v507
    %1432 = vmatpush1.bf16.msra.mxu0 %v506
    %1433 = vmatprep.subr.bf16.mxu0 %v511
    %1434 = vmatpush1.bf16.msra.mxu0 %v510
    %1435 = vmatprep.subr.bf16.mxu0 %v515
    %1436 = vmatpush1.bf16.msra.mxu0 %v514
    %1437 = vmatprep.subr.bf16.mxu0 %v519
    %1438 = vmatpush1.bf16.msra.mxu0 %v518
    %1439 = vmatprep.subr.bf16.mxu0 %v523
    %1440 = vmatpush1.bf16.msra.mxu0 %v522
    %1441 = vmatprep.subr.bf16.mxu0 %v527
    %1442 = vmatpush1.bf16.msra.mxu0 %v526
    %1443 = vmatprep.subr.bf16.mxu0 0
    %1444 = vmatpush1.bf16.msra.mxu0 0
    %1445 = vmatprep.subr.bf16.mxu0 0
    %1446 = vmatpush1.bf16.msra.mxu0 0
    %1447 = vmatprep.subr.bf16.mxu0 0
    %1448 = vmatpush1.bf16.msra.mxu0 0
    %1449 = vmatprep.subr.bf16.mxu0 0
    %1450 = vmatpush1.bf16.msra.mxu0 0
    %1451 = vmatprep.subr.bf16.mxu0 0
    %1452 = vmatpush1.bf16.msra.mxu0 0
    %1453 = vmatprep.subr.bf16.mxu0 0
    %1454 = vmatpush1.bf16.msra.mxu0 0
    %1455 = vmatprep.subr.bf16.mxu0 0
    %1456 = vmatpush1.bf16.msra.mxu0 0
    %1457 = vmatprep.subr.bf16.mxu0 0
    %1458 = vmatpush1.bf16.msra.mxu0 0
    %1459 = vmatprep.mubr.bf16.mxu0 0
    %1460 = vmatmul.mubr.bf16.gmra.mrb[0].mxu0 %v1385
    %v1461 = vpop.f32.mrb[0].mxu0
    %v1462 = vadd.f32 0.0, %v1461
    %v1463 = vpop.f32.mrb[0].mxu0
    %v1464 = vadd.f32 0.0, %v1463
    %v1465 = vpop.f32.mrb[0].mxu0
    %v1466 = vpop.f32.mrb[0].mxu0
    %1467 = vdwg.mxu0
    %v1468 = vadd.f32 %v1381, %v1421
    %v1469 = vadd.f32 %v1382, %v1423
    %v1470 = vadd.f32 %v1383, %v1462
    %v1471 = vadd.f32 %v1384, %v1464
    %v1472 = vxor.u32 %v1468, 2147483648
    %v1473 = vmul.f32 %v1472, 1.442695
    %v1474 = vpow.pop %v1473
    %v1475 = vadd.f32 %v1474, 1.0
    %v1476 = vrcp.pop %v1475
    %v1477 = vmul.f32 1.0, %v1476
    %v1478 = vxor.u32 %v1469, 2147483648
    %v1479 = vmul.f32 %v1478, 1.442695
    %v1480 = vpow.pop %v1479
    %v1481 = vadd.f32 %v1480, 1.0
    %v1482 = vrcp.pop %v1481
    %v1483 = vmul.f32 1.0, %v1482
    %v1484 = vtanh.pop %v1470
    %v1485 = vxor.u32 %v1471, 2147483648
    %v1486 = vmul.f32 %v1485, 1.442695
    %v1487 = vpow.pop %v1486
    %v1488 = vadd.f32 %v1487, 1.0
    %v1489 = vrcp.pop %v1488
    %v1490 = vmul.f32 1.0, %v1489
    %v1491 = vmul.f32 %v1483, %v1375
    %v1492 = vmul.f32 %v1477, %v1484
    %v1493 = vadd.f32 %v1491, %v1492
    %v1494 = vtanh.pop %v1493
    %v1495 = vmul.f32 %v1490, %v1494
    %1496 = vst [vmem:[#allocation2] sm:$0xff] %v1495
    %1497 = vst [vmem:[#allocation3] sm:$0xff] %v1493
    // Predicated region
    $region54: #{lstm_forward.1} parent=1 // pred_check
      %p1498 = pneg %p103
    $region55: #{lstm_forward.1} parent=1 // pred_check_branch
      %1500 = sbr.rel (%p1498) target = $region57
    $region56: #{lstm_forward.1} parent=1 // pred_region
      %v1501 = vpack.c.bf16 %v1495, %v1495
      %v1502 = vld [vmem:[#allocation13] sm:$0xf]
      %v1503 = vld [vmem:[#allocation13 + $0x4] sm:$0xf]
      %v1504 = vld [vmem:[#allocation13 + $0x8] sm:$0xf]
      %v1505 = vld [vmem:[#allocation13 + $0xc] sm:$0xf]
      %v1506 = vld [vmem:[#allocation13 + $0x10] sm:$0xf]
      %v1507 = vld [vmem:[#allocation13 + $0x14] sm:$0xf]
      %v1508 = vld [vmem:[#allocation13 + $0x18] sm:$0xf]
      %v1509 = vld [vmem:[#allocation13 + $0x1c] sm:$0xf]
      %v1510 = vld [vmem:[#allocation13 + $0x20] sm:$0xf]
      %v1511 = vld [vmem:[#allocation13 + $0x24] sm:$0xf]
      %v1512 = vld [vmem:[#allocation13 + $0x28] sm:$0xf]
      %v1513 = vld [vmem:[#allocation13 + $0x2c] sm:$0xf]
      %v1514 = vld [vmem:[#allocation13 + $0x30] sm:$0xf]
      %v1515 = vld [vmem:[#allocation13 + $0x34] sm:$0xf]
      %v1516 = vld [vmem:[#allocation13 + $0x38] sm:$0xf]
      %v1517 = vld [vmem:[#allocation13 + $0x3c] sm:$0xf]
      %v1518 = vld [vmem:[#allocation14] sm:$0x1]
      %v1520 = vlaneseq
      %v1521 = vshrl.u32 %v1520, 7
      %v1522 = vsub.s32 0, %v1521
      %v1523 = vrot.slane %v1518, %v1522
      %v1541 = vunpack.c.l.b16 %v1502
      %v1542 = vunpack.c.l.b16 %v1503
      %v1543 = vunpack.c.l.b16 %v1504
      %v1544 = vunpack.c.l.b16 %v1505
      %v1545 = vunpack.c.l.b16 %v1506
      %v1546 = vunpack.c.l.b16 %v1507
      %v1547 = vunpack.c.l.b16 %v1508
      %v1548 = vunpack.c.l.b16 %v1509
      %v1549 = vunpack.c.l.b16 %v1510
      %v1550 = vunpack.c.l.b16 %v1511
      %v1551 = vunpack.c.l.b16 %v1512
      %v1552 = vunpack.c.l.b16 %v1513
      %v1553 = vunpack.c.l.b16 %v1514
      %v1554 = vunpack.c.l.b16 %v1515
      %v1555 = vunpack.c.l.b16 %v1516
      %v1556 = vunpack.c.l.b16 %v1517
      %v1557 = vpack.c.b16 %v1542, %v1541
      %v1558 = vpack.c.b16 %v1544, %v1543
      %v1559 = vpack.c.b16 %v1546, %v1545
      %v1560 = vpack.c.b16 %v1548, %v1547
      %v1561 = vpack.c.b16 %v1550, %v1549
      %v1562 = vpack.c.b16 %v1552, %v1551
      %v1563 = vpack.c.b16 %v1554, %v1553
      %v1564 = vpack.c.b16 %v1556, %v1555
      %1573 = vmatprep.subr.bf16.mxu0 0
      %1574 = vmatpush1.bf16.msra.mxu0 %v1557
      %1575 = vmatprep.subr.bf16.mxu0 0
      %1576 = vmatpush1.bf16.msra.mxu0 %v1558
      %1577 = vmatprep.subr.bf16.mxu0 0
      %1578 = vmatpush1.bf16.msra.mxu0 %v1559
      %1579 = vmatprep.subr.bf16.mxu0 0
      %1580 = vmatpush1.bf16.msra.mxu0 %v1560
      %1581 = vmatprep.subr.bf16.mxu0 0
      %1582 = vmatpush1.bf16.msra.mxu0 %v1561
      %1583 = vmatprep.subr.bf16.mxu0 0
      %1584 = vmatpush1.bf16.msra.mxu0 %v1562
      %1585 = vmatprep.subr.bf16.mxu0 0
      %1586 = vmatpush1.bf16.msra.mxu0 %v1563
      %1587 = vmatprep.subr.bf16.mxu0 0
      %1588 = vmatpush1.bf16.msra.mxu0 %v1564
      %1589 = vmatprep.subr.bf16.mxu0 0
      %1590 = vmatpush1.bf16.msra.mxu0 0
      %1591 = vmatprep.subr.bf16.mxu0 0
      %1592 = vmatpush1.bf16.msra.mxu0 0
      %1593 = vmatprep.subr.bf16.mxu0 0
      %1594 = vmatpush1.bf16.msra.mxu0 0
      %1595 = vmatprep.subr.bf16.mxu0 0
      %1596 = vmatpush1.bf16.msra.mxu0 0
      %1597 = vmatprep.subr.bf16.mxu0 0
      %1598 = vmatpush1.bf16.msra.mxu0 0
      %1599 = vmatprep.subr.bf16.mxu0 0
      %1600 = vmatpush1.bf16.msra.mxu0 0
      %1601 = vmatprep.subr.bf16.mxu0 0
      %1602 = vmatpush1.bf16.msra.mxu0 0
      %1603 = vmatprep.subr.bf16.mxu0 0
      %1604 = vmatpush1.bf16.msra.mxu0 0
      %1605 = vmatprep.mubr.bf16.mxu0 0
      %1606 = vmatmul.mubr.bf16.gmra.mrb[0].mxu0 %v1501
      %v1607 = vpop.f32.mrb[0].mxu0
      %v1608 = vadd.f32 %v1523, %v1607
      %v1609 = vpop.f32.mrb[0].mxu0
      %v1610 = vpop.f32.mrb[0].mxu0
      %v1611 = vpop.f32.mrb[0].mxu0
      %1612 = vdwg.mxu0
      %1613 = vst [vmem:[#allocation16] sm:$0xff] %v1608
    $region57: #{lstm_forward.1} parent=1 // pred_fallthru
      _
    // Predicated region
    $region58: #{lstm_forward.1} parent=1 // pred_check
      _
    $region59: #{lstm_forward.1} parent=1 // pred_check_branch
      %1615 = sbr.rel (0) target = $region61
    $region60: #{lstm_forward.1} parent=1 // pred_region
      %s1617 = ssub.s32 128, 128
      %1618 = vsyncadd [#allocation7], %s1617
      %s1620 = sshll.u32 [#allocation16], 4
      %s1621 = int_to_ptr.vmem [resolvable:$true] %s1620
      %1623 = dma.vmem_to_hbm [thread:$0]  %s1621, 128, %s6, [#allocation7]
    $region61: #{lstm_forward.1} parent=1 // pred_fallthru
      _
    // Predicated region
    $region62: #{lstm_forward.1} parent=1 // pred_check
      _
    $region63: #{lstm_forward.1} parent=1 // pred_check_branch
      %1625 = sbr.rel (0) target = $region65
    $region64: #{lstm_forward.1} parent=1 // pred_region
      %1626 = dma.done [#allocation7], 128
    $region65: #{lstm_forward.1} parent=1 // pred_fallthru
      _
    %1627 = vsyncpa [#allocation6], 1
    %1628 = vsyncpa [#allocation9], 1
    %1629 = vsyncpa [#allocation12], 1
    %1630 = vsyncpa [#allocation15], 1
    %1631 = vsyncpa [#allocation7], 1

</llo_original>
